<compile_context>
chip_gen: v5e
topology: v5e:2x2
jax: 0.10.0
libtpu: 0.0.40
codegen_flags: <defaults>
</compile_context>

<pallas_src>
import functools

import jax
import jax.numpy as jnp
from jax.experimental import pallas as pl
from jax.experimental.pallas import tpu as pltpu

NUM_CLASSES = 15
OUT_PAD = 128          # lane-dense logits width
BN_EPS = 1e-5
TM_MAX = 1024          # max batch tile (amortizes per-step pipeline overhead)

D0, D1, D2 = 512, 256, 256   # hidden widths


def _round_up(n, m):
    return ((n + m - 1) // m) * m


def _choose_tm(b):
    """Batch-tile heuristic (see perf review):
       * at least 16 rows so bf16 output tiles are sublane-dense,
       * small batches: single tile with minimal row padding (v5e is MXU-bound
         for this kernel, so padded rows are pure wasted FLOPs),
       * large batches: tiles up to TM_MAX and >=2 grid steps so the
         'parallel' batch axis shards across both TensorCores on v7x."""
    b16 = _round_up(b, 16)
    if b16 <= 256:
        return b16
    half = _round_up((b16 + 1) // 2, 256)
    return min(TM_MAX, half)


# --------------------------------------------------------------------------
# Kernel: one (TM, 512) f32 batch tile -> (TM, 128) bf16 padded-logits tile.
# All weights/shifts are resident in VMEM across grid iterations.
# --------------------------------------------------------------------------
def _classifier_kernel(x_ref,
                       w1_ref, b1_ref,
                       w2_ref, b2_ref,
                       w3_ref, b3_ref,
                       w4_ref,
                       y_ref):
    # In-kernel f32 -> bf16 cast (x is streamed from HBM as f32).
    x = x_ref[...].astype(jnp.bfloat16)                               # (TM, 512)

    # fc1 (BN scale folded into w1) -> +shift -> relu
    h = jnp.dot(x, w1_ref[...], preferred_element_type=jnp.float32)
    h = jnp.maximum(h + b1_ref[...], 0.0).astype(jnp.bfloat16)

    # fc1_1 -> +shift -> relu
    h = jnp.dot(h, w2_ref[...], preferred_element_type=jnp.float32)
    h = jnp.maximum(h + b2_ref[...], 0.0).astype(jnp.bfloat16)

    # fc1_2 -> +shift -> relu
    h = jnp.dot(h, w3_ref[...], preferred_element_type=jnp.float32)
    h = jnp.maximum(h + b3_ref[...], 0.0).astype(jnp.bfloat16)

    # fc2 (padded to 128 lanes); f32 accumulation, bf16 writeback.
    y = jnp.dot(h, w4_ref[...], preferred_element_type=jnp.float32)
    y_ref[...] = y.astype(jnp.bfloat16)


# --------------------------------------------------------------------------
# One-time parameter preparation (outside the jitted forward):
#   transpose, fold BN scale into weights, pad logits to 128, cast to bf16.
# --------------------------------------------------------------------------
def prepare_kernel_params(params, num_classes=NUM_CLASSES, eps=BN_EPS):
    def fold(gamma, rv):
        return (gamma / jnp.sqrt(rv + eps)).astype(jnp.float32)

    s1 = fold(params["bn1_g"], params["bn1_rv"])
    s2 = fold(params["bn1_1_g"], params["bn1_1_rv"])
    s3 = fold(params["bn1_2_g"], params["bn1_2_rv"])

    sh1 = (params["bn1_b"] - params["bn1_rm"] * s1)[None, :].astype(jnp.float32)
    sh2 = (params["bn1_1_b"] - params["bn1_1_rm"] * s2)[None, :].astype(jnp.float32)
    sh3 = (params["bn1_2_b"] - params["bn1_2_rm"] * s3)[None, :].astype(jnp.float32)

    # Transposed (in, out) weights with BN scale folded into output columns.
    w1 = (params["fc1_w"].T * s1[None, :]).astype(jnp.bfloat16)      # (512, 512)
    w2 = (params["fc1_1_w"].T * s2[None, :]).astype(jnp.bfloat16)    # (512, 256)
    w3 = (params["fc1_2_w"].T * s3[None, :]).astype(jnp.bfloat16)    # (256, 256)

    # fc2, padded to 128 output lanes with zero columns.
    w4 = params["fc2_w"].T.astype(jnp.float32)                        # (256, nc)
    w4 = jnp.pad(w4, ((0, 0), (0, OUT_PAD - num_classes))).astype(jnp.bfloat16)

    # TODO(synk): optional fp8 weight quantization for v7x (per-column scale
    # folded like the BN scale) if small-batch weight-load latency matters.
    return {"w1": w1, "sh1": sh1, "w2": w2, "sh2": sh2,
            "w3": w3, "sh3": sh3, "w4": w4}


# --------------------------------------------------------------------------
# Jitted forward: reshape/pad x (f32), run the tiled pallas_call, slice output.
# --------------------------------------------------------------------------
@functools.partial(jax.jit, static_argnames=("num_classes",))
def classifier_spk_forward(x, kparams, num_classes=NUM_CLASSES):
    b = x.shape[0]
    x2 = jnp.reshape(x, (b, -1)).astype(jnp.float32)     # torch.flatten(x, 1)
    assert x2.shape[1] == D0, "flattened feature dim must be 512"

    tm = _choose_tm(b)
    b_pad = _round_up(b, tm)
    if b_pad != b:
        # Single fused reshape+pad pass on f32 (no separate cast pass).
        x2 = jnp.pad(x2, ((0, b_pad - b), (0, 0)))

    grid = (b_pad // tm,)

    in_specs = [
        pl.BlockSpec((tm, D0), lambda i: (i, 0)),       # x tile, f32 (pipelined)
        pl.BlockSpec((D0, D0), lambda i: (0, 0)),       # w1 (resident)
        pl.BlockSpec((1, D0), lambda i: (0, 0)),        # shift1
        pl.BlockSpec((D0, D1), lambda i: (0, 0)),       # w2
        pl.BlockSpec((1, D1), lambda i: (0, 0)),        # shift2
        pl.BlockSpec((D1, D2), lambda i: (0, 0)),       # w3
        pl.BlockSpec((1, D2), lambda i: (0, 0)),        # shift3
        pl.BlockSpec((D2, OUT_PAD), lambda i: (0, 0)),  # w4 (padded)
    ]
    out_specs = pl.BlockSpec((tm, OUT_PAD), lambda i: (i, 0))

    w_elems = D0 * D0 + D0 * D1 + D1 * D2 + D2 * OUT_PAD
    cost = pl.CostEstimate(
        flops=2 * b_pad * w_elems,
        transcendentals=0,
        bytes_accessed=b_pad * D0 * 4            # x read (f32)
                       + w_elems * 2             # bf16 weights
                       + (D0 + D1 + D2) * 4      # f32 shifts
                       + b_pad * OUT_PAD * 2,    # bf16 logits writeback
    )

    y_full = pl.pallas_call(
        _classifier_kernel,
        out_shape=jax.ShapeDtypeStruct((b_pad, OUT_PAD), jnp.bfloat16),
        grid=grid,
        in_specs=in_specs,
        out_specs=out_specs,
        cost_estimate=cost,
        compiler_params=pltpu.CompilerParams(
            dimension_semantics=("parallel",),
            vmem_limit_bytes=32 << 20,
        ),
    )(x2,
      kparams["w1"], kparams["sh1"],
      kparams["w2"], kparams["sh2"],
      kparams["w3"], kparams["sh3"],
      kparams["w4"])

    # Slice away padded rows/lanes; return f32 like the PyTorch module.
    return y_full[:b, :num_classes].astype(jnp.float32)


# --------------------------------------------------------------------------
# Synthetic parameters matching the PyTorch module's shapes.
# --------------------------------------------------------------------------
def init_params(key, num_classes=NUM_CLASSES):
    ks = jax.random.split(key, 4)

    def lin(k, out_f, in_f):
        bound = 1.0 / jnp.sqrt(in_f)
        return jax.random.uniform(k, (out_f, in_f), jnp.float32, -bound, bound)

    params = {
        "fc1_w":   lin(ks[0], 512, 512),
        "fc1_1_w": lin(ks[1], 256, 512),
        "fc1_2_w": lin(ks[2], 256, 256),
        "fc2_w":   lin(ks[3], num_classes, 256),
    }
    # Non-trivial BN stats so the folding path is actually exercised.
    kb = jax.random.split(key, 7)[4:]
    for i, (name, c) in enumerate((("bn1", 512), ("bn1_1", 256), ("bn1_2", 256))):
        kk = jax.random.split(kb[i], 4)
        params[f"{name}_g"] = 1.0 + 0.1 * jax.random.normal(kk[0], (c,), jnp.float32)
        params[f"{name}_b"] = 0.1 * jax.random.normal(kk[1], (c,), jnp.float32)
        params[f"{name}_rm"] = 0.1 * jax.random.normal(kk[2], (c,), jnp.float32)
        params[f"{name}_rv"] = 1.0 + 0.1 * jax.random.uniform(kk[3], (c,), jnp.float32)
    return params


def _reference_forward(x, params):
    """Pure-JAX f32 reference for a correctness check."""
    b = x.shape[0]
    h = jnp.reshape(x, (b, -1)).astype(jnp.float32)

    def bn(h, g, bta, rm, rv):
        return (h - rm) / jnp.sqrt(rv + BN_EPS) * g + bta

    h = h @ params["fc1_w"].T
    h = jnp.maximum(bn(h, params["bn1_g"], params["bn1_b"],
                       params["bn1_rm"], params["bn1_rv"]), 0.0)
    h = h @ params["fc1_1_w"].T
    h = jnp.maximum(bn(h, params["bn1_1_g"], params["bn1_1_b"],
                       params["bn1_1_rm"], params["bn1_1_rv"]), 0.0)
    h = h @ params["fc1_2_w"].T
    h = jnp.maximum(bn(h, params["bn1_2_g"], params["bn1_2_b"],
                       params["bn1_2_rm"], params["bn1_2_rv"]), 0.0)
    return h @ params["fc2_w"].T


if __name__ == "__main__":
    key = jax.random.PRNGKey(0)
    k_x, k_p = jax.random.split(key)

    # Input that flattens to 512 features per sample: (B, C, H, W) = (2, 2, 16, 16)
    x = jax.random.normal(k_x, (2, 2, 16, 16), jnp.float32)
    params = init_params(k_p)
    kparams = prepare_kernel_params(params)     # one-time prep (outside jit)

    y = classifier_spk_forward(x, kparams)
    y = jax.block_until_ready(y)

    y_ref = _reference_forward(x, params)
    assert y.shape == (2, NUM_CLASSES)
    # bf16 matmuls + bf16 logit writeback vs f32 reference -> relaxed tolerance.
    assert jnp.allclose(y, y_ref, atol=4e-2, rtol=4e-2), (
        "mismatch vs JAX reference: max abs err = "
        f"{float(jnp.max(jnp.abs(y - y_ref)))}")

    print("KERNEL_OK")
</pallas_src>

<mosaic_0001>
module attributes {stable_mosaic.version = 11 : i64} {
  func.func @_classifier_kernel(%arg0: i32, %arg1: memref<16x512xf32, #tpu.memory_space<vmem>>, %arg2: memref<512x512xbf16, #tpu.memory_space<vmem>>, %arg3: memref<1x512xf32, #tpu.memory_space<vmem>>, %arg4: memref<512x256xbf16, #tpu.memory_space<vmem>>, %arg5: memref<1x256xf32, #tpu.memory_space<vmem>>, %arg6: memref<256x256xbf16, #tpu.memory_space<vmem>>, %arg7: memref<1x256xf32, #tpu.memory_space<vmem>>, %arg8: memref<256x128xbf16, #tpu.memory_space<vmem>>, %arg9: memref<16x128xbf16, #tpu.memory_space<vmem>>) attributes {dimension_semantics = [#tpu.dimension_semantics<parallel>], iteration_bounds = array<i64: 1>, scalar_prefetch = 0 : i64, scratch_operands = 0 : i64, tpu.core_type = #tpu.core_type<tc>, window_params = [{transform_indices = @transform_0, window_bounds = array<i64: 16, 512>}, {pipeline_mode = #tpu.pipeline_mode<synchronous>, transform_indices = @transform_1, window_bounds = array<i64: 512, 512>}, {pipeline_mode = #tpu.pipeline_mode<synchronous>, transform_indices = @transform_2, window_bounds = array<i64: 1, 512>}, {pipeline_mode = #tpu.pipeline_mode<synchronous>, transform_indices = @transform_3, window_bounds = array<i64: 512, 256>}, {pipeline_mode = #tpu.pipeline_mode<synchronous>, transform_indices = @transform_4, window_bounds = array<i64: 1, 256>}, {pipeline_mode = #tpu.pipeline_mode<synchronous>, transform_indices = @transform_5, window_bounds = array<i64: 256, 256>}, {pipeline_mode = #tpu.pipeline_mode<synchronous>, transform_indices = @transform_6, window_bounds = array<i64: 1, 256>}, {pipeline_mode = #tpu.pipeline_mode<synchronous>, transform_indices = @transform_7, window_bounds = array<i64: 256, 128>}, {transform_indices = @transform_8, window_bounds = array<i64: 16, 128>}]} {
    %c0 = arith.constant 0 : index
    %c0_0 = arith.constant 0 : index
    %0 = vector.load %arg1[%c0, %c0_0] : memref<16x512xf32, #tpu.memory_space<vmem>>, vector<16x512xf32>
    %1 = arith.truncf %0 : vector<16x512xf32> to vector<16x512xbf16>
    %c0_1 = arith.constant 0 : index
    %c0_2 = arith.constant 0 : index
    %2 = vector.load %arg2[%c0_1, %c0_2] : memref<512x512xbf16, #tpu.memory_space<vmem>>, vector<512x512xbf16>
    %cst = arith.constant dense<0.000000e+00> : vector<16x512xf32>
    %3 = tpu.matmul %1, %2, %cst {dimension_numbers = #tpu.dot_dimension_numbers<[1], [0], [0], [1], [0, 0, 1, 1], [], []>} : vector<16x512xbf16>, vector<512x512xbf16>, vector<16x512xf32> -> vector<16x512xf32>
    %c0_3 = arith.constant 0 : index
    %c0_4 = arith.constant 0 : index
    %4 = vector.load %arg3[%c0_3, %c0_4] : memref<1x512xf32, #tpu.memory_space<vmem>>, vector<1x512xf32>
    %5 = vector.broadcast %4 : vector<1x512xf32> to vector<16x512xf32>
    %6 = arith.addf %3, %5 : vector<16x512xf32>
    %cst_5 = arith.constant 0.000000e+00 : f32
    %7 = vector.broadcast %cst_5 : f32 to vector<16x512xf32>
    %8 = arith.maximumf %6, %7 : vector<16x512xf32>
    %9 = arith.truncf %8 : vector<16x512xf32> to vector<16x512xbf16>
    %c0_6 = arith.constant 0 : index
    %c0_7 = arith.constant 0 : index
    %10 = vector.load %arg4[%c0_6, %c0_7] : memref<512x256xbf16, #tpu.memory_space<vmem>>, vector<512x256xbf16>
    %cst_8 = arith.constant dense<0.000000e+00> : vector<16x256xf32>
    %11 = tpu.matmul %9, %10, %cst_8 {dimension_numbers = #tpu.dot_dimension_numbers<[1], [0], [0], [1], [0, 0, 1, 1], [], []>} : vector<16x512xbf16>, vector<512x256xbf16>, vector<16x256xf32> -> vector<16x256xf32>
    %c0_9 = arith.constant 0 : index
    %c0_10 = arith.constant 0 : index
    %12 = vector.load %arg5[%c0_9, %c0_10] : memref<1x256xf32, #tpu.memory_space<vmem>>, vector<1x256xf32>
    %13 = vector.broadcast %12 : vector<1x256xf32> to vector<16x256xf32>
    %14 = arith.addf %11, %13 : vector<16x256xf32>
    %cst_11 = arith.constant 0.000000e+00 : f32
    %15 = vector.broadcast %cst_11 : f32 to vector<16x256xf32>
    %16 = arith.maximumf %14, %15 : vector<16x256xf32>
    %17 = arith.truncf %16 : vector<16x256xf32> to vector<16x256xbf16>
    %c0_12 = arith.constant 0 : index
    %c0_13 = arith.constant 0 : index
    %18 = vector.load %arg6[%c0_12, %c0_13] : memref<256x256xbf16, #tpu.memory_space<vmem>>, vector<256x256xbf16>
    %cst_14 = arith.constant dense<0.000000e+00> : vector<16x256xf32>
    %19 = tpu.matmul %17, %18, %cst_14 {dimension_numbers = #tpu.dot_dimension_numbers<[1], [0], [0], [1], [0, 0, 1, 1], [], []>} : vector<16x256xbf16>, vector<256x256xbf16>, vector<16x256xf32> -> vector<16x256xf32>
    %c0_15 = arith.constant 0 : index
    %c0_16 = arith.constant 0 : index
    %20 = vector.load %arg7[%c0_15, %c0_16] : memref<1x256xf32, #tpu.memory_space<vmem>>, vector<1x256xf32>
    %21 = vector.broadcast %20 : vector<1x256xf32> to vector<16x256xf32>
    %22 = arith.addf %19, %21 : vector<16x256xf32>
    %cst_17 = arith.constant 0.000000e+00 : f32
    %23 = vector.broadcast %cst_17 : f32 to vector<16x256xf32>
    %24 = arith.maximumf %22, %23 : vector<16x256xf32>
    %25 = arith.truncf %24 : vector<16x256xf32> to vector<16x256xbf16>
    %c0_18 = arith.constant 0 : index
    %c0_19 = arith.constant 0 : index
    %26 = vector.load %arg8[%c0_18, %c0_19] : memref<256x128xbf16, #tpu.memory_space<vmem>>, vector<256x128xbf16>
    %cst_20 = arith.constant dense<0.000000e+00> : vector<16x128xf32>
    %27 = tpu.matmul %25, %26, %cst_20 {dimension_numbers = #tpu.dot_dimension_numbers<[1], [0], [0], [1], [0, 0, 1, 1], [], []>} : vector<16x256xbf16>, vector<256x128xbf16>, vector<16x128xf32> -> vector<16x128xf32>
    %28 = arith.truncf %27 : vector<16x128xf32> to vector<16x128xbf16>
    %c0_21 = arith.constant 0 : index
    %c0_22 = arith.constant 0 : index
    %29 = vector.load %arg9[%c0_21, %c0_22] : memref<16x128xbf16, #tpu.memory_space<vmem>>, vector<16x128xbf16>
    tpu.vector_store %arg9[%c0_21, %c0_22], %28 {strides = array<i32>} : memref<16x128xbf16, #tpu.memory_space<vmem>>, vector<16x128xbf16>,
    return
  }
  func.func @transform_0(%arg0: i32) -> (i32, i32) {
    %c0_i32 = arith.constant 0 : i32
    %c0_i32_0 = arith.constant 0 : i32
    return %arg0, %c0_i32 : i32, i32
  }
  func.func @transform_1(%arg0: i32) -> (i32, i32) {
    %c0_i32 = arith.constant 0 : i32
    %c0_i32_0 = arith.constant 0 : i32
    %c0_i32_1 = arith.constant 0 : i32
    return %c0_i32, %c0_i32_0 : i32, i32
  }
  func.func @transform_2(%arg0: i32) -> (i32, i32) {
    %c0_i32 = arith.constant 0 : i32
    %c0_i32_0 = arith.constant 0 : i32
    %c0_i32_1 = arith.constant 0 : i32
    return %c0_i32, %c0_i32_0 : i32, i32
  }
  func.func @transform_3(%arg0: i32) -> (i32, i32) {
    %c0_i32 = arith.constant 0 : i32
    %c0_i32_0 = arith.constant 0 : i32
    %c0_i32_1 = arith.constant 0 : i32
    return %c0_i32, %c0_i32_0 : i32, i32
  }
  func.func @transform_4(%arg0: i32) -> (i32, i32) {
    %c0_i32 = arith.constant 0 : i32
    %c0_i32_0 = arith.constant 0 : i32
    %c0_i32_1 = arith.constant 0 : i32
    return %c0_i32, %c0_i32_0 : i32, i32
  }
  func.func @transform_5(%arg0: i32) -> (i32, i32) {
    %c0_i32 = arith.constant 0 : i32
    %c0_i32_0 = arith.constant 0 : i32
    %c0_i32_1 = arith.constant 0 : i32
    return %c0_i32, %c0_i32_0 : i32, i32
  }
  func.func @transform_6(%arg0: i32) -> (i32, i32) {
    %c0_i32 = arith.constant 0 : i32
    %c0_i32_0 = arith.constant 0 : i32
    %c0_i32_1 = arith.constant 0 : i32
    return %c0_i32, %c0_i32_0 : i32, i32
  }
  func.func @transform_7(%arg0: i32) -> (i32, i32) {
    %c0_i32 = arith.constant 0 : i32
    %c0_i32_0 = arith.constant 0 : i32
    %c0_i32_1 = arith.constant 0 : i32
    return %c0_i32, %c0_i32_0 : i32, i32
  }
  func.func @transform_8(%arg0: i32) -> (i32, i32) {
    %c0_i32 = arith.constant 0 : i32
    %c0_i32_0 = arith.constant 0 : i32
    return %arg0, %c0_i32 : i32, i32
  }
}

</mosaic_0001>

<llo_original>
// kernel: classifier_spk_forward.1
$region0: #{classifier_spk_forward.1}
  #allocation0 [shape = 'u32[]', space=smem, size = 0x4, offset = 0x4, fixed_abs, tag = 'smem constant byte address 0x4 - core index']
  #allocation1 [shape = 'u32[72,128]{1,0:T(1,128)}', space=vmem, size = 0x9000, scoped, tag = 'internal scratch']
  %s0 = inlined_call_operand.vmem [shape: f32[16,512], index: 0, kind: input, shape index: {}]
  %s1 = inlined_call_operand.hbm [shape: bf16[512,512], index: 1, kind: input, shape index: {}]
  %s2 = inlined_call_operand.vmem [shape: f32[1,512], index: 2, kind: input, shape index: {}]
  %s3 = inlined_call_operand.hbm [shape: bf16[512,256], index: 3, kind: input, shape index: {}]
  %s4 = inlined_call_operand.vmem [shape: f32[1,256], index: 4, kind: input, shape index: {}]
  %s5 = inlined_call_operand.hbm [shape: bf16[256,256], index: 5, kind: input, shape index: {}]
  %s6 = inlined_call_operand.vmem [shape: f32[1,256], index: 6, kind: input, shape index: {}]
  %s7 = inlined_call_operand.vmem [shape: bf16[256,128], index: 7, kind: input, shape index: {}]
  %s8 = inlined_call_operand.vmem [shape: bf16[16,128], index: 8, kind: output, shape index: {}]
  %s9 = sld [smem:[#allocation0]]
  $region54: #{classifier_spk_forward.1} parent=0
    _
  %s11 = ssub.s32 1, %s9
  %s12 = scalar_select 0, %s11, %s9
  $region1: #{classifier_spk_forward.1} parent=0
    #allocation2 [shape = 'u8[524288]{0}', space=vmem, size = 0x80000, scoped, tag = 'input window, operand 1, single buffered']
    #allocation3 [shape = 's32[1]{0}', space=sflag, size = 0x4, scoped, tag = 'scoped memory for classifier_spk_forward.1']
    #allocation4 [shape = 'u8[262144]{0}', space=vmem, size = 0x40000, scoped, tag = 'input window, operand 3, single buffered']
    #allocation5 [shape = 's32[1]{0}', space=sflag, size = 0x4, scoped, tag = 'scoped memory for classifier_spk_forward.1']
    #allocation6 [shape = 'u8[131072]{0}', space=vmem, size = 0x20000, scoped, tag = 'input window, operand 5, single buffered']
    %13 = vsyncpa [#allocation3], 0
    %14 = vsyncpa [#allocation5], 0
    // Predicated region
    $region2: #{classifier_spk_forward.1} parent=1 // pred_check
      _
    $region3: #{classifier_spk_forward.1} parent=1 // pred_check_branch
      %16 = sbr.rel (0) target = $region5
    $region4: #{classifier_spk_forward.1} parent=1 // pred_region
      _
    $region5: #{classifier_spk_forward.1} parent=1 // pred_fallthru
      _
    // Predicated region
    $region6: #{classifier_spk_forward.1} parent=1 // pred_check
      _
    $region7: #{classifier_spk_forward.1} parent=1 // pred_check_branch
      %18 = sbr.rel (0) target = $region9
    $region8: #{classifier_spk_forward.1} parent=1 // pred_region
      %20 = vsyncadd [#allocation3], 0
      %s21 = sshll.u32 %s1, 4
      %s22 = int_to_ptr.hbm [resolvable:$true] %s21
      %s23 = sshll.u32 [#allocation2], 4
      %s24 = int_to_ptr.vmem [resolvable:$true] %s23
      %29 = dma.hbm_to_vmem [thread:$0]  %s22, 16384, %s24, [#allocation3], 256, 256, 16
    $region9: #{classifier_spk_forward.1} parent=1 // pred_fallthru
      _
    // Predicated region
    $region10: #{classifier_spk_forward.1} parent=1 // pred_check
      _
    $region11: #{classifier_spk_forward.1} parent=1 // pred_check_branch
      %31 = sbr.rel (0) target = $region13
    $region12: #{classifier_spk_forward.1} parent=1 // pred_region
      _
    $region13: #{classifier_spk_forward.1} parent=1 // pred_fallthru
      _
    // Predicated region
    $region14: #{classifier_spk_forward.1} parent=1 // pred_check
      _
    $region15: #{classifier_spk_forward.1} parent=1 // pred_check_branch
      %33 = sbr.rel (0) target = $region17
    $region16: #{classifier_spk_forward.1} parent=1 // pred_region
      %35 = vsyncadd [#allocation5], 0
      %s36 = sshll.u32 %s3, 4
      %s37 = int_to_ptr.hbm [resolvable:$true] %s36
      %s38 = sshll.u32 [#allocation4], 4
      %s39 = int_to_ptr.vmem [resolvable:$true] %s38
      %44 = dma.hbm_to_vmem [thread:$0]  %s37, 8192, %s39, [#allocation5], 128, 128, 8
    $region17: #{classifier_spk_forward.1} parent=1 // pred_fallthru
      _
    // Predicated region
    $region18: #{classifier_spk_forward.1} parent=1 // pred_check
      _
    $region19: #{classifier_spk_forward.1} parent=1 // pred_check_branch
      %46 = sbr.rel (0) target = $region21
    $region20: #{classifier_spk_forward.1} parent=1 // pred_region
      _
    $region21: #{classifier_spk_forward.1} parent=1 // pred_fallthru
      _
    // Predicated region
    $region22: #{classifier_spk_forward.1} parent=1 // pred_check
      _
    $region23: #{classifier_spk_forward.1} parent=1 // pred_check_branch
      %48 = sbr.rel (0) target = $region25
    $region24: #{classifier_spk_forward.1} parent=1 // pred_region
      %50 = vsyncadd [#allocation5], 0
      %s51 = sshll.u32 %s5, 4
      %s52 = int_to_ptr.hbm [resolvable:$true] %s51
      %s53 = sshll.u32 [#allocation6], 4
      %s54 = int_to_ptr.vmem [resolvable:$true] %s53
      %59 = dma.hbm_to_vmem [thread:$0]  %s52, 4096, %s54, [#allocation5], 128, 128, 8
    $region25: #{classifier_spk_forward.1} parent=1 // pred_fallthru
      _
    // Predicated region
    $region26: #{classifier_spk_forward.1} parent=1 // pred_check
      _
    $region27: #{classifier_spk_forward.1} parent=1 // pred_check_branch
      %61 = sbr.rel (0) target = $region29
    $region28: #{classifier_spk_forward.1} parent=1 // pred_region
      _
    $region29: #{classifier_spk_forward.1} parent=1 // pred_fallthru
      _
    // Predicated region
    $region30: #{classifier_spk_forward.1} parent=1 // pred_check
      _
    $region31: #{classifier_spk_forward.1} parent=1 // pred_check_branch
      %63 = sbr.rel (0) target = $region33
    $region32: #{classifier_spk_forward.1} parent=1 // pred_region
      _
    $region33: #{classifier_spk_forward.1} parent=1 // pred_fallthru
      _
    // Predicated region
    $region34: #{classifier_spk_forward.1} parent=1 // pred_check
      _
    $region35: #{classifier_spk_forward.1} parent=1 // pred_check_branch
      %65 = sbr.rel (0) target = $region37
    $region36: #{classifier_spk_forward.1} parent=1 // pred_region
      %67 = dma.done [#allocation3], 16384
    $region37: #{classifier_spk_forward.1} parent=1 // pred_fallthru
      _
    // Predicated region
    $region38: #{classifier_spk_forward.1} parent=1 // pred_check
      _
    $region39: #{classifier_spk_forward.1} parent=1 // pred_check_branch
      %69 = sbr.rel (0) target = $region41
    $region40: #{classifier_spk_forward.1} parent=1 // pred_region
      %71 = dma.done [#allocation5], 8192
    $region41: #{classifier_spk_forward.1} parent=1 // pred_fallthru
      _
    // Predicated region
    $region42: #{classifier_spk_forward.1} parent=1 // pred_check
      _
    $region43: #{classifier_spk_forward.1} parent=1 // pred_check_branch
      %73 = sbr.rel (0) target = $region45
    $region44: #{classifier_spk_forward.1} parent=1 // pred_region
      %75 = dma.done [#allocation5], 4096
    $region45: #{classifier_spk_forward.1} parent=1 // pred_fallthru
      _
    %v76 = vld [vmem:[%s0] sm:$0xff]
    %v77 = vld [vmem:[%s0 + $0x8] sm:$0xff]
    %v78 = vld [vmem:[%s0 + $0x10] sm:$0xff]
    %v79 = vld [vmem:[%s0 + $0x18] sm:$0xff]
    %v80 = vld [vmem:[%s0 + $0x20] sm:$0xff]
    %v81 = vld [vmem:[%s0 + $0x28] sm:$0xff]
    %v82 = vld [vmem:[%s0 + $0x30] sm:$0xff]
    %v83 = vld [vmem:[%s0 + $0x38] sm:$0xff]
    %v84 = vpack.c.bf16 %v80, %v76
    %v85 = vpack.c.bf16 %v81, %v77
    %v86 = vpack.c.bf16 %v82, %v78
    %v87 = vpack.c.bf16 %v83, %v79
    %v88 = vld [vmem:[#allocation2] sm:$0xff]
    %v89 = vld [vmem:[#allocation2 + $0x8] sm:$0xff]
    %v90 = vld [vmem:[#allocation2 + $0x10] sm:$0xff]
    %v91 = vld [vmem:[#allocation2 + $0x18] sm:$0xff]
    %v92 = vld [vmem:[#allocation2 + $0x20] sm:$0xff]
    %v93 = vld [vmem:[#allocation2 + $0x28] sm:$0xff]
    %v94 = vld [vmem:[#allocation2 + $0x30] sm:$0xff]
    %v95 = vld [vmem:[#allocation2 + $0x38] sm:$0xff]
    %v96 = vld [vmem:[#allocation2 + $0x40] sm:$0xff]
    %v97 = vld [vmem:[#allocation2 + $0x48] sm:$0xff]
    %v98 = vld [vmem:[#allocation2 + $0x50] sm:$0xff]
    %v99 = vld [vmem:[#allocation2 + $0x58] sm:$0xff]
    %v100 = vld [vmem:[#allocation2 + $0x60] sm:$0xff]
    %v101 = vld [vmem:[#allocation2 + $0x68] sm:$0xff]
    %v102 = vld [vmem:[#allocation2 + $0x70] sm:$0xff]
    %v103 = vld [vmem:[#allocation2 + $0x78] sm:$0xff]
    %v104 = vld [vmem:[#allocation2 + $0x80] sm:$0xff]
    %v105 = vld [vmem:[#allocation2 + $0x88] sm:$0xff]
    %v106 = vld [vmem:[#allocation2 + $0x90] sm:$0xff]
    %v107 = vld [vmem:[#allocation2 + $0x98] sm:$0xff]
    %v108 = vld [vmem:[#allocation2 + $0xa0] sm:$0xff]
    %v109 = vld [vmem:[#allocation2 + $0xa8] sm:$0xff]
    %v110 = vld [vmem:[#allocation2 + $0xb0] sm:$0xff]
    %v111 = vld [vmem:[#allocation2 + $0xb8] sm:$0xff]
    %v112 = vld [vmem:[#allocation2 + $0xc0] sm:$0xff]
    %v113 = vld [vmem:[#allocation2 + $0xc8] sm:$0xff]
    %v114 = vld [vmem:[#allocation2 + $0xd0] sm:$0xff]
    %v115 = vld [vmem:[#allocation2 + $0xd8] sm:$0xff]
    %v116 = vld [vmem:[#allocation2 + $0xe0] sm:$0xff]
    %v117 = vld [vmem:[#allocation2 + $0xe8] sm:$0xff]
    %v118 = vld [vmem:[#allocation2 + $0xf0] sm:$0xff]
    %v119 = vld [vmem:[#allocation2 + $0xf8] sm:$0xff]
    %v120 = vld [vmem:[#allocation2 + $0x100] sm:$0xff]
    %v121 = vld [vmem:[#allocation2 + $0x108] sm:$0xff]
    %v122 = vld [vmem:[#allocation2 + $0x110] sm:$0xff]
    %v123 = vld [vmem:[#allocation2 + $0x118] sm:$0xff]
    %v124 = vld [vmem:[#allocation2 + $0x120] sm:$0xff]
    %v125 = vld [vmem:[#allocation2 + $0x128] sm:$0xff]
    %v126 = vld [vmem:[#allocation2 + $0x130] sm:$0xff]
    %v127 = vld [vmem:[#allocation2 + $0x138] sm:$0xff]
    %v128 = vld [vmem:[#allocation2 + $0x140] sm:$0xff]
    %v129 = vld [vmem:[#allocation2 + $0x148] sm:$0xff]
    %v130 = vld [vmem:[#allocation2 + $0x150] sm:$0xff]
    %v131 = vld [vmem:[#allocation2 + $0x158] sm:$0xff]
    %v132 = vld [vmem:[#allocation2 + $0x160] sm:$0xff]
    %v133 = vld [vmem:[#allocation2 + $0x168] sm:$0xff]
    %v134 = vld [vmem:[#allocation2 + $0x170] sm:$0xff]
    %v135 = vld [vmem:[#allocation2 + $0x178] sm:$0xff]
    %v136 = vld [vmem:[#allocation2 + $0x180] sm:$0xff]
    %v137 = vld [vmem:[#allocation2 + $0x188] sm:$0xff]
    %v138 = vld [vmem:[#allocation2 + $0x190] sm:$0xff]
    %v139 = vld [vmem:[#allocation2 + $0x198] sm:$0xff]
    %v140 = vld [vmem:[#allocation2 + $0x1a0] sm:$0xff]
    %v141 = vld [vmem:[#allocation2 + $0x1a8] sm:$0xff]
    %v142 = vld [vmem:[#allocation2 + $0x1b0] sm:$0xff]
    %v143 = vld [vmem:[#allocation2 + $0x1b8] sm:$0xff]
    %v144 = vld [vmem:[#allocation2 + $0x1c0] sm:$0xff]
    %v145 = vld [vmem:[#allocation2 + $0x1c8] sm:$0xff]
    %v146 = vld [vmem:[#allocation2 + $0x1d0] sm:$0xff]
    %v147 = vld [vmem:[#allocation2 + $0x1d8] sm:$0xff]
    %v148 = vld [vmem:[#allocation2 + $0x1e0] sm:$0xff]
    %v149 = vld [vmem:[#allocation2 + $0x1e8] sm:$0xff]
    %v150 = vld [vmem:[#allocation2 + $0x1f0] sm:$0xff]
    %v151 = vld [vmem:[#allocation2 + $0x1f8] sm:$0xff]
    %v152 = vld [vmem:[#allocation2 + $0x200] sm:$0xff]
    %v153 = vld [vmem:[#allocation2 + $0x208] sm:$0xff]
    %v154 = vld [vmem:[#allocation2 + $0x210] sm:$0xff]
    %v155 = vld [vmem:[#allocation2 + $0x218] sm:$0xff]
    %v156 = vld [vmem:[#allocation2 + $0x220] sm:$0xff]
    %v157 = vld [vmem:[#allocation2 + $0x228] sm:$0xff]
    %v158 = vld [vmem:[#allocation2 + $0x230] sm:$0xff]
    %v159 = vld [vmem:[#allocation2 + $0x238] sm:$0xff]
    %v160 = vld [vmem:[#allocation2 + $0x240] sm:$0xff]
    %v161 = vld [vmem:[#allocation2 + $0x248] sm:$0xff]
    %v162 = vld [vmem:[#allocation2 + $0x250] sm:$0xff]
    %v163 = vld [vmem:[#allocation2 + $0x258] sm:$0xff]
    %v164 = vld [vmem:[#allocation2 + $0x260] sm:$0xff]
    %v165 = vld [vmem:[#allocation2 + $0x268] sm:$0xff]
    %v166 = vld [vmem:[#allocation2 + $0x270] sm:$0xff]
    %v167 = vld [vmem:[#allocation2 + $0x278] sm:$0xff]
    %v168 = vld [vmem:[#allocation2 + $0x280] sm:$0xff]
    %v169 = vld [vmem:[#allocation2 + $0x288] sm:$0xff]
    %v170 = vld [vmem:[#allocation2 + $0x290] sm:$0xff]
    %v171 = vld [vmem:[#allocation2 + $0x298] sm:$0xff]
    %v172 = vld [vmem:[#allocation2 + $0x2a0] sm:$0xff]
    %v173 = vld [vmem:[#allocation2 + $0x2a8] sm:$0xff]
    %v174 = vld [vmem:[#allocation2 + $0x2b0] sm:$0xff]
    %v175 = vld [vmem:[#allocation2 + $0x2b8] sm:$0xff]
    %v176 = vld [vmem:[#allocation2 + $0x2c0] sm:$0xff]
    %v177 = vld [vmem:[#allocation2 + $0x2c8] sm:$0xff]
    %v178 = vld [vmem:[#allocation2 + $0x2d0] sm:$0xff]
    %v179 = vld [vmem:[#allocation2 + $0x2d8] sm:$0xff]
    %v180 = vld [vmem:[#allocation2 + $0x2e0] sm:$0xff]
    %v181 = vld [vmem:[#allocation2 + $0x2e8] sm:$0xff]
    %v182 = vld [vmem:[#allocation2 + $0x2f0] sm:$0xff]
    %v183 = vld [vmem:[#allocation2 + $0x2f8] sm:$0xff]
    %v184 = vld [vmem:[#allocation2 + $0x300] sm:$0xff]
    %v185 = vld [vmem:[#allocation2 + $0x308] sm:$0xff]
    %v186 = vld [vmem:[#allocation2 + $0x310] sm:$0xff]
    %v187 = vld [vmem:[#allocation2 + $0x318] sm:$0xff]
    %v188 = vld [vmem:[#allocation2 + $0x320] sm:$0xff]
    %v189 = vld [vmem:[#allocation2 + $0x328] sm:$0xff]
    %v190 = vld [vmem:[#allocation2 + $0x330] sm:$0xff]
    %v191 = vld [vmem:[#allocation2 + $0x338] sm:$0xff]
    %v192 = vld [vmem:[#allocation2 + $0x340] sm:$0xff]
    %v193 = vld [vmem:[#allocation2 + $0x348] sm:$0xff]
    %v194 = vld [vmem:[#allocation2 + $0x350] sm:$0xff]
    %v195 = vld [vmem:[#allocation2 + $0x358] sm:$0xff]
    %v196 = vld [vmem:[#allocation2 + $0x360] sm:$0xff]
    %v197 = vld [vmem:[#allocation2 + $0x368] sm:$0xff]
    %v198 = vld [vmem:[#allocation2 + $0x370] sm:$0xff]
    %v199 = vld [vmem:[#allocation2 + $0x378] sm:$0xff]
    %v200 = vld [vmem:[#allocation2 + $0x380] sm:$0xff]
    %v201 = vld [vmem:[#allocation2 + $0x388] sm:$0xff]
    %v202 = vld [vmem:[#allocation2 + $0x390] sm:$0xff]
    %v203 = vld [vmem:[#allocation2 + $0x398] sm:$0xff]
    %v204 = vld [vmem:[#allocation2 + $0x3a0] sm:$0xff]
    %v205 = vld [vmem:[#allocation2 + $0x3a8] sm:$0xff]
    %v206 = vld [vmem:[#allocation2 + $0x3b0] sm:$0xff]
    %v207 = vld [vmem:[#allocation2 + $0x3b8] sm:$0xff]
    %v208 = vld [vmem:[#allocation2 + $0x3c0] sm:$0xff]
    %v209 = vld [vmem:[#allocation2 + $0x3c8] sm:$0xff]
    %v210 = vld [vmem:[#allocation2 + $0x3d0] sm:$0xff]
    %v211 = vld [vmem:[#allocation2 + $0x3d8] sm:$0xff]
    %v212 = vld [vmem:[#allocation2 + $0x3e0] sm:$0xff]
    %v213 = vld [vmem:[#allocation2 + $0x3e8] sm:$0xff]
    %v214 = vld [vmem:[#allocation2 + $0x3f0] sm:$0xff]
    %v215 = vld [vmem:[#allocation2 + $0x3f8] sm:$0xff]
    %v216 = vld [vmem:[%s2] sm:$0xf]
    %v218 = vperm.slane %v216, 0
    %v219 = vperm.slane %v216, 1
    %v220 = vperm.slane %v216, 2
    %v221 = vperm.slane %v216, 3
    %v354 = vunpack.c.l.b16 %v88
    %v355 = vunpack.c.h.b16 %v88
    %v356 = vunpack.c.l.b16 %v89
    %v357 = vunpack.c.h.b16 %v89
    %v358 = vunpack.c.l.b16 %v90
    %v359 = vunpack.c.h.b16 %v90
    %v360 = vunpack.c.l.b16 %v91
    %v361 = vunpack.c.h.b16 %v91
    %v362 = vunpack.c.l.b16 %v92
    %v363 = vunpack.c.h.b16 %v92
    %v364 = vunpack.c.l.b16 %v93
    %v365 = vunpack.c.h.b16 %v93
    %v366 = vunpack.c.l.b16 %v94
    %v367 = vunpack.c.h.b16 %v94
    %v368 = vunpack.c.l.b16 %v95
    %v369 = vunpack.c.h.b16 %v95
    %v370 = vunpack.c.l.b16 %v96
    %v371 = vunpack.c.h.b16 %v96
    %v372 = vunpack.c.l.b16 %v97
    %v373 = vunpack.c.h.b16 %v97
    %v374 = vunpack.c.l.b16 %v98
    %v375 = vunpack.c.h.b16 %v98
    %v376 = vunpack.c.l.b16 %v99
    %v377 = vunpack.c.h.b16 %v99
    %v378 = vunpack.c.l.b16 %v100
    %v379 = vunpack.c.h.b16 %v100
    %v380 = vunpack.c.l.b16 %v101
    %v381 = vunpack.c.h.b16 %v101
    %v382 = vunpack.c.l.b16 %v102
    %v383 = vunpack.c.h.b16 %v102
    %v384 = vunpack.c.l.b16 %v103
    %v385 = vunpack.c.h.b16 %v103
    %v386 = vunpack.c.l.b16 %v104
    %v387 = vunpack.c.h.b16 %v104
    %v388 = vunpack.c.l.b16 %v105
    %v389 = vunpack.c.h.b16 %v105
    %v390 = vunpack.c.l.b16 %v106
    %v391 = vunpack.c.h.b16 %v106
    %v392 = vunpack.c.l.b16 %v107
    %v393 = vunpack.c.h.b16 %v107
    %v394 = vunpack.c.l.b16 %v108
    %v395 = vunpack.c.h.b16 %v108
    %v396 = vunpack.c.l.b16 %v109
    %v397 = vunpack.c.h.b16 %v109
    %v398 = vunpack.c.l.b16 %v110
    %v399 = vunpack.c.h.b16 %v110
    %v400 = vunpack.c.l.b16 %v111
    %v401 = vunpack.c.h.b16 %v111
    %v402 = vunpack.c.l.b16 %v112
    %v403 = vunpack.c.h.b16 %v112
    %v404 = vunpack.c.l.b16 %v113
    %v405 = vunpack.c.h.b16 %v113
    %v406 = vunpack.c.l.b16 %v114
    %v407 = vunpack.c.h.b16 %v114
    %v408 = vunpack.c.l.b16 %v115
    %v409 = vunpack.c.h.b16 %v115
    %v410 = vunpack.c.l.b16 %v116
    %v411 = vunpack.c.h.b16 %v116
    %v412 = vunpack.c.l.b16 %v117
    %v413 = vunpack.c.h.b16 %v117
    %v414 = vunpack.c.l.b16 %v118
    %v415 = vunpack.c.h.b16 %v118
    %v416 = vunpack.c.l.b16 %v119
    %v417 = vunpack.c.h.b16 %v119
    %v418 = vunpack.c.l.b16 %v120
    %v419 = vunpack.c.h.b16 %v120
    %v420 = vunpack.c.l.b16 %v121
    %v421 = vunpack.c.h.b16 %v121
    %v422 = vunpack.c.l.b16 %v122
    %v423 = vunpack.c.h.b16 %v122
    %v424 = vunpack.c.l.b16 %v123
    %v425 = vunpack.c.h.b16 %v123
    %v426 = vunpack.c.l.b16 %v124
    %v427 = vunpack.c.h.b16 %v124
    %v428 = vunpack.c.l.b16 %v125
    %v429 = vunpack.c.h.b16 %v125
    %v430 = vunpack.c.l.b16 %v126
    %v431 = vunpack.c.h.b16 %v126
    %v432 = vunpack.c.l.b16 %v127
    %v433 = vunpack.c.h.b16 %v127
    %v434 = vunpack.c.l.b16 %v128
    %v435 = vunpack.c.h.b16 %v128
    %v436 = vunpack.c.l.b16 %v129
    %v437 = vunpack.c.h.b16 %v129
    %v438 = vunpack.c.l.b16 %v130
    %v439 = vunpack.c.h.b16 %v130
    %v440 = vunpack.c.l.b16 %v131
    %v441 = vunpack.c.h.b16 %v131
    %v442 = vunpack.c.l.b16 %v132
    %v443 = vunpack.c.h.b16 %v132
    %v444 = vunpack.c.l.b16 %v133
    %v445 = vunpack.c.h.b16 %v133
    %v446 = vunpack.c.l.b16 %v134
    %v447 = vunpack.c.h.b16 %v134
    %v448 = vunpack.c.l.b16 %v135
    %v449 = vunpack.c.h.b16 %v135
    %v450 = vunpack.c.l.b16 %v136
    %v451 = vunpack.c.h.b16 %v136
    %v452 = vunpack.c.l.b16 %v137
    %v453 = vunpack.c.h.b16 %v137
    %v454 = vunpack.c.l.b16 %v138
    %v455 = vunpack.c.h.b16 %v138
    %v456 = vunpack.c.l.b16 %v139
    %v457 = vunpack.c.h.b16 %v139
    %v458 = vunpack.c.l.b16 %v140
    %v459 = vunpack.c.h.b16 %v140
    %v460 = vunpack.c.l.b16 %v141
    %v461 = vunpack.c.h.b16 %v141
    %v462 = vunpack.c.l.b16 %v142
    %v463 = vunpack.c.h.b16 %v142
    %v464 = vunpack.c.l.b16 %v143
    %v465 = vunpack.c.h.b16 %v143
    %v466 = vunpack.c.l.b16 %v144
    %v467 = vunpack.c.h.b16 %v144
    %v468 = vunpack.c.l.b16 %v145
    %v469 = vunpack.c.h.b16 %v145
    %v470 = vunpack.c.l.b16 %v146
    %v471 = vunpack.c.h.b16 %v146
    %v472 = vunpack.c.l.b16 %v147
    %v473 = vunpack.c.h.b16 %v147
    %v474 = vunpack.c.l.b16 %v148
    %v475 = vunpack.c.h.b16 %v148
    %v476 = vunpack.c.l.b16 %v149
    %v477 = vunpack.c.h.b16 %v149
    %v478 = vunpack.c.l.b16 %v150
    %v479 = vunpack.c.h.b16 %v150
    %v480 = vunpack.c.l.b16 %v151
    %v481 = vunpack.c.h.b16 %v151
    %v482 = vunpack.c.l.b16 %v152
    %v483 = vunpack.c.h.b16 %v152
    %v484 = vunpack.c.l.b16 %v153
    %v485 = vunpack.c.h.b16 %v153
    %v486 = vunpack.c.l.b16 %v154
    %v487 = vunpack.c.h.b16 %v154
    %v488 = vunpack.c.l.b16 %v155
    %v489 = vunpack.c.h.b16 %v155
    %v490 = vunpack.c.l.b16 %v156
    %v491 = vunpack.c.h.b16 %v156
    %v492 = vunpack.c.l.b16 %v157
    %v493 = vunpack.c.h.b16 %v157
    %v494 = vunpack.c.l.b16 %v158
    %v495 = vunpack.c.h.b16 %v158
    %v496 = vunpack.c.l.b16 %v159
    %v497 = vunpack.c.h.b16 %v159
    %v498 = vunpack.c.l.b16 %v160
    %v499 = vunpack.c.h.b16 %v160
    %v500 = vunpack.c.l.b16 %v161
    %v501 = vunpack.c.h.b16 %v161
    %v502 = vunpack.c.l.b16 %v162
    %v503 = vunpack.c.h.b16 %v162
    %v504 = vunpack.c.l.b16 %v163
    %v505 = vunpack.c.h.b16 %v163
    %v506 = vunpack.c.l.b16 %v164
    %v507 = vunpack.c.h.b16 %v164
    %v508 = vunpack.c.l.b16 %v165
    %v509 = vunpack.c.h.b16 %v165
    %v510 = vunpack.c.l.b16 %v166
    %v511 = vunpack.c.h.b16 %v166
    %v512 = vunpack.c.l.b16 %v167
    %v513 = vunpack.c.h.b16 %v167
    %v514 = vunpack.c.l.b16 %v168
    %v515 = vunpack.c.h.b16 %v168
    %v516 = vunpack.c.l.b16 %v169
    %v517 = vunpack.c.h.b16 %v169
    %v518 = vunpack.c.l.b16 %v170
    %v519 = vunpack.c.h.b16 %v170
    %v520 = vunpack.c.l.b16 %v171
    %v521 = vunpack.c.h.b16 %v171
    %v522 = vunpack.c.l.b16 %v172
    %v523 = vunpack.c.h.b16 %v172
    %v524 = vunpack.c.l.b16 %v173
    %v525 = vunpack.c.h.b16 %v173
    %v526 = vunpack.c.l.b16 %v174
    %v527 = vunpack.c.h.b16 %v174
    %v528 = vunpack.c.l.b16 %v175
    %v529 = vunpack.c.h.b16 %v175
    %v530 = vunpack.c.l.b16 %v176
    %v531 = vunpack.c.h.b16 %v176
    %v532 = vunpack.c.l.b16 %v177
    %v533 = vunpack.c.h.b16 %v177
    %v534 = vunpack.c.l.b16 %v178
    %v535 = vunpack.c.h.b16 %v178
    %v536 = vunpack.c.l.b16 %v179
    %v537 = vunpack.c.h.b16 %v179
    %v538 = vunpack.c.l.b16 %v180
    %v539 = vunpack.c.h.b16 %v180
    %v540 = vunpack.c.l.b16 %v181
    %v541 = vunpack.c.h.b16 %v181
    %v542 = vunpack.c.l.b16 %v182
    %v543 = vunpack.c.h.b16 %v182
    %v544 = vunpack.c.l.b16 %v183
    %v545 = vunpack.c.h.b16 %v183
    %v546 = vunpack.c.l.b16 %v184
    %v547 = vunpack.c.h.b16 %v184
    %v548 = vunpack.c.l.b16 %v185
    %v549 = vunpack.c.h.b16 %v185
    %v550 = vunpack.c.l.b16 %v186
    %v551 = vunpack.c.h.b16 %v186
    %v552 = vunpack.c.l.b16 %v187
    %v553 = vunpack.c.h.b16 %v187
    %v554 = vunpack.c.l.b16 %v188
    %v555 = vunpack.c.h.b16 %v188
    %v556 = vunpack.c.l.b16 %v189
    %v557 = vunpack.c.h.b16 %v189
    %v558 = vunpack.c.l.b16 %v190
    %v559 = vunpack.c.h.b16 %v190
    %v560 = vunpack.c.l.b16 %v191
    %v561 = vunpack.c.h.b16 %v191
    %v562 = vunpack.c.l.b16 %v192
    %v563 = vunpack.c.h.b16 %v192
    %v564 = vunpack.c.l.b16 %v193
    %v565 = vunpack.c.h.b16 %v193
    %v566 = vunpack.c.l.b16 %v194
    %v567 = vunpack.c.h.b16 %v194
    %v568 = vunpack.c.l.b16 %v195
    %v569 = vunpack.c.h.b16 %v195
    %v570 = vunpack.c.l.b16 %v196
    %v571 = vunpack.c.h.b16 %v196
    %v572 = vunpack.c.l.b16 %v197
    %v573 = vunpack.c.h.b16 %v197
    %v574 = vunpack.c.l.b16 %v198
    %v575 = vunpack.c.h.b16 %v198
    %v576 = vunpack.c.l.b16 %v199
    %v577 = vunpack.c.h.b16 %v199
    %v578 = vunpack.c.l.b16 %v200
    %v579 = vunpack.c.h.b16 %v200
    %v580 = vunpack.c.l.b16 %v201
    %v581 = vunpack.c.h.b16 %v201
    %v582 = vunpack.c.l.b16 %v202
    %v583 = vunpack.c.h.b16 %v202
    %v584 = vunpack.c.l.b16 %v203
    %v585 = vunpack.c.h.b16 %v203
    %v586 = vunpack.c.l.b16 %v204
    %v587 = vunpack.c.h.b16 %v204
    %v588 = vunpack.c.l.b16 %v205
    %v589 = vunpack.c.h.b16 %v205
    %v590 = vunpack.c.l.b16 %v206
    %v591 = vunpack.c.h.b16 %v206
    %v592 = vunpack.c.l.b16 %v207
    %v593 = vunpack.c.h.b16 %v207
    %v594 = vunpack.c.l.b16 %v208
    %v595 = vunpack.c.h.b16 %v208
    %v596 = vunpack.c.l.b16 %v209
    %v597 = vunpack.c.h.b16 %v209
    %v598 = vunpack.c.l.b16 %v210
    %v599 = vunpack.c.h.b16 %v210
    %v600 = vunpack.c.l.b16 %v211
    %v601 = vunpack.c.h.b16 %v211
    %v602 = vunpack.c.l.b16 %v212
    %v603 = vunpack.c.h.b16 %v212
    %v604 = vunpack.c.l.b16 %v213
    %v605 = vunpack.c.h.b16 %v213
    %v606 = vunpack.c.l.b16 %v214
    %v607 = vunpack.c.h.b16 %v214
    %v608 = vunpack.c.l.b16 %v215
    %v609 = vunpack.c.h.b16 %v215
    %v610 = vpack.c.b16 %v358, %v354
    %v611 = vpack.c.b16 %v359, %v355
    %v612 = vpack.c.b16 %v360, %v356
    %v613 = vpack.c.b16 %v361, %v357
    %v614 = vpack.c.b16 %v366, %v362
    %v615 = vpack.c.b16 %v367, %v363
    %v616 = vpack.c.b16 %v368, %v364
    %v617 = vpack.c.b16 %v369, %v365
    %v618 = vpack.c.b16 %v374, %v370
    %v619 = vpack.c.b16 %v375, %v371
    %v620 = vpack.c.b16 %v376, %v372
    %v621 = vpack.c.b16 %v377, %v373
    %v622 = vpack.c.b16 %v382, %v378
    %v623 = vpack.c.b16 %v383, %v379
    %v624 = vpack.c.b16 %v384, %v380
    %v625 = vpack.c.b16 %v385, %v381
    %v626 = vpack.c.b16 %v390, %v386
    %v627 = vpack.c.b16 %v391, %v387
    %v628 = vpack.c.b16 %v392, %v388
    %v629 = vpack.c.b16 %v393, %v389
    %v630 = vpack.c.b16 %v398, %v394
    %v631 = vpack.c.b16 %v399, %v395
    %v632 = vpack.c.b16 %v400, %v396
    %v633 = vpack.c.b16 %v401, %v397
    %v634 = vpack.c.b16 %v406, %v402
    %v635 = vpack.c.b16 %v407, %v403
    %v636 = vpack.c.b16 %v408, %v404
    %v637 = vpack.c.b16 %v409, %v405
    %v638 = vpack.c.b16 %v414, %v410
    %v639 = vpack.c.b16 %v415, %v411
    %v640 = vpack.c.b16 %v416, %v412
    %v641 = vpack.c.b16 %v417, %v413
    %v642 = vpack.c.b16 %v422, %v418
    %v643 = vpack.c.b16 %v423, %v419
    %v644 = vpack.c.b16 %v424, %v420
    %v645 = vpack.c.b16 %v425, %v421
    %v646 = vpack.c.b16 %v430, %v426
    %v647 = vpack.c.b16 %v431, %v427
    %v648 = vpack.c.b16 %v432, %v428
    %v649 = vpack.c.b16 %v433, %v429
    %v650 = vpack.c.b16 %v438, %v434
    %v651 = vpack.c.b16 %v439, %v435
    %v652 = vpack.c.b16 %v440, %v436
    %v653 = vpack.c.b16 %v441, %v437
    %v654 = vpack.c.b16 %v446, %v442
    %v655 = vpack.c.b16 %v447, %v443
    %v656 = vpack.c.b16 %v448, %v444
    %v657 = vpack.c.b16 %v449, %v445
    %v658 = vpack.c.b16 %v454, %v450
    %v659 = vpack.c.b16 %v455, %v451
    %v660 = vpack.c.b16 %v456, %v452
    %v661 = vpack.c.b16 %v457, %v453
    %v662 = vpack.c.b16 %v462, %v458
    %v663 = vpack.c.b16 %v463, %v459
    %v664 = vpack.c.b16 %v464, %v460
    %v665 = vpack.c.b16 %v465, %v461
    %v666 = vpack.c.b16 %v470, %v466
    %v667 = vpack.c.b16 %v471, %v467
    %v668 = vpack.c.b16 %v472, %v468
    %v669 = vpack.c.b16 %v473, %v469
    %v670 = vpack.c.b16 %v478, %v474
    %v671 = vpack.c.b16 %v479, %v475
    %v672 = vpack.c.b16 %v480, %v476
    %v673 = vpack.c.b16 %v481, %v477
    %v674 = vpack.c.b16 %v486, %v482
    %v675 = vpack.c.b16 %v487, %v483
    %v676 = vpack.c.b16 %v488, %v484
    %v677 = vpack.c.b16 %v489, %v485
    %v678 = vpack.c.b16 %v494, %v490
    %v679 = vpack.c.b16 %v495, %v491
    %v680 = vpack.c.b16 %v496, %v492
    %v681 = vpack.c.b16 %v497, %v493
    %v682 = vpack.c.b16 %v502, %v498
    %v683 = vpack.c.b16 %v503, %v499
    %v684 = vpack.c.b16 %v504, %v500
    %v685 = vpack.c.b16 %v505, %v501
    %v686 = vpack.c.b16 %v510, %v506
    %v687 = vpack.c.b16 %v511, %v507
    %v688 = vpack.c.b16 %v512, %v508
    %v689 = vpack.c.b16 %v513, %v509
    %v690 = vpack.c.b16 %v518, %v514
    %v691 = vpack.c.b16 %v519, %v515
    %v692 = vpack.c.b16 %v520, %v516
    %v693 = vpack.c.b16 %v521, %v517
    %v694 = vpack.c.b16 %v526, %v522
    %v695 = vpack.c.b16 %v527, %v523
    %v696 = vpack.c.b16 %v528, %v524
    %v697 = vpack.c.b16 %v529, %v525
    %v698 = vpack.c.b16 %v534, %v530
    %v699 = vpack.c.b16 %v535, %v531
    %v700 = vpack.c.b16 %v536, %v532
    %v701 = vpack.c.b16 %v537, %v533
    %v702 = vpack.c.b16 %v542, %v538
    %v703 = vpack.c.b16 %v543, %v539
    %v704 = vpack.c.b16 %v544, %v540
    %v705 = vpack.c.b16 %v545, %v541
    %v706 = vpack.c.b16 %v550, %v546
    %v707 = vpack.c.b16 %v551, %v547
    %v708 = vpack.c.b16 %v552, %v548
    %v709 = vpack.c.b16 %v553, %v549
    %v710 = vpack.c.b16 %v558, %v554
    %v711 = vpack.c.b16 %v559, %v555
    %v712 = vpack.c.b16 %v560, %v556
    %v713 = vpack.c.b16 %v561, %v557
    %v714 = vpack.c.b16 %v566, %v562
    %v715 = vpack.c.b16 %v567, %v563
    %v716 = vpack.c.b16 %v568, %v564
    %v717 = vpack.c.b16 %v569, %v565
    %v718 = vpack.c.b16 %v574, %v570
    %v719 = vpack.c.b16 %v575, %v571
    %v720 = vpack.c.b16 %v576, %v572
    %v721 = vpack.c.b16 %v577, %v573
    %v722 = vpack.c.b16 %v582, %v578
    %v723 = vpack.c.b16 %v583, %v579
    %v724 = vpack.c.b16 %v584, %v580
    %v725 = vpack.c.b16 %v585, %v581
    %v726 = vpack.c.b16 %v590, %v586
    %v727 = vpack.c.b16 %v591, %v587
    %v728 = vpack.c.b16 %v592, %v588
    %v729 = vpack.c.b16 %v593, %v589
    %v730 = vpack.c.b16 %v598, %v594
    %v731 = vpack.c.b16 %v599, %v595
    %v732 = vpack.c.b16 %v600, %v596
    %v733 = vpack.c.b16 %v601, %v597
    %v734 = vpack.c.b16 %v606, %v602
    %v735 = vpack.c.b16 %v607, %v603
    %v736 = vpack.c.b16 %v608, %v604
    %v737 = vpack.c.b16 %v609, %v605
    %866 = vmatpush.bf16.msra.mxu0 %v638
    %867 = vmatpush.bf16.msra.mxu0 %v634
    %868 = vmatpush.bf16.msra.mxu0 %v630
    %869 = vmatpush.bf16.msra.mxu0 %v626
    %870 = vmatpush.bf16.msra.mxu0 %v622
    %871 = vmatpush.bf16.msra.mxu0 %v618
    %872 = vmatpush.bf16.msra.mxu0 %v614
    %873 = vmatpush.bf16.msra.mxu0 %v610
    %874 = vmatmul.bf16.gmra.mxu0 %v84
    %v875 = vpop.f32.mrf.mxu0
    %v876 = vadd.f32 %v218, %v875
    %v877 = vpop.f32.mrf.mxu0
    %v878 = vadd.f32 %v218, %v877
    %879 = vdwg.mxu0
    %880 = vmatpush.bf16.msra.mxu0 %v670
    %881 = vmatpush.bf16.msra.mxu0 %v666
    %882 = vmatpush.bf16.msra.mxu0 %v662
    %883 = vmatpush.bf16.msra.mxu0 %v658
    %884 = vmatpush.bf16.msra.mxu0 %v654
    %885 = vmatpush.bf16.msra.mxu0 %v650
    %886 = vmatpush.bf16.msra.mxu0 %v646
    %887 = vmatpush.bf16.msra.mxu0 %v642
    %888 = vmatmul.bf16.gmra.mxu0 %v85
    %v889 = vpop.f32.mrf.mxu0
    %v890 = vadd.f32 %v876, %v889
    %v891 = vpop.f32.mrf.mxu0
    %v892 = vadd.f32 %v878, %v891
    %893 = vdwg.mxu0
    %894 = vmatpush.bf16.msra.mxu0 %v702
    %895 = vmatpush.bf16.msra.mxu0 %v698
    %896 = vmatpush.bf16.msra.mxu0 %v694
    %897 = vmatpush.bf16.msra.mxu0 %v690
    %898 = vmatpush.bf16.msra.mxu0 %v686
    %899 = vmatpush.bf16.msra.mxu0 %v682
    %900 = vmatpush.bf16.msra.mxu0 %v678
    %901 = vmatpush.bf16.msra.mxu0 %v674
    %902 = vmatmul.bf16.gmra.mxu0 %v86
    %v903 = vpop.f32.mrf.mxu0
    %v904 = vadd.f32 %v890, %v903
    %v905 = vpop.f32.mrf.mxu0
    %v906 = vadd.f32 %v892, %v905
    %907 = vdwg.mxu0
    %908 = vmatpush.bf16.msra.mxu0 %v734
    %909 = vmatpush.bf16.msra.mxu0 %v730
    %910 = vmatpush.bf16.msra.mxu0 %v726
    %911 = vmatpush.bf16.msra.mxu0 %v722
    %912 = vmatpush.bf16.msra.mxu0 %v718
    %913 = vmatpush.bf16.msra.mxu0 %v714
    %914 = vmatpush.bf16.msra.mxu0 %v710
    %915 = vmatpush.bf16.msra.mxu0 %v706
    %916 = vmatmul.bf16.gmra.mxu0 %v87
    %v917 = vpop.f32.mrf.mxu0
    %v918 = vadd.f32 %v904, %v917
    %v919 = vpop.f32.mrf.mxu0
    %v920 = vadd.f32 %v906, %v919
    %921 = vdwg.mxu0
    %922 = vmatpush.bf16.msra.mxu0 %v639
    %923 = vmatpush.bf16.msra.mxu0 %v635
    %924 = vmatpush.bf16.msra.mxu0 %v631
    %925 = vmatpush.bf16.msra.mxu0 %v627
    %926 = vmatpush.bf16.msra.mxu0 %v623
    %927 = vmatpush.bf16.msra.mxu0 %v619
    %928 = vmatpush.bf16.msra.mxu0 %v615
    %929 = vmatpush.bf16.msra.mxu0 %v611
    %930 = vmatmul.bf16.gmra.mxu0 %v84
    %v931 = vpop.f32.mrf.mxu0
    %v932 = vadd.f32 %v219, %v931
    %v933 = vpop.f32.mrf.mxu0
    %v934 = vadd.f32 %v219, %v933
    %935 = vdwg.mxu0
    %936 = vmatpush.bf16.msra.mxu0 %v671
    %937 = vmatpush.bf16.msra.mxu0 %v667
    %938 = vmatpush.bf16.msra.mxu0 %v663
    %939 = vmatpush.bf16.msra.mxu0 %v659
    %940 = vmatpush.bf16.msra.mxu0 %v655
    %941 = vmatpush.bf16.msra.mxu0 %v651
    %942 = vmatpush.bf16.msra.mxu0 %v647
    %943 = vmatpush.bf16.msra.mxu0 %v643
    %944 = vmatmul.bf16.gmra.mxu0 %v85
    %v945 = vpop.f32.mrf.mxu0
    %v946 = vadd.f32 %v932, %v945
    %v947 = vpop.f32.mrf.mxu0
    %v948 = vadd.f32 %v934, %v947
    %949 = vdwg.mxu0
    %950 = vmatpush.bf16.msra.mxu0 %v703
    %951 = vmatpush.bf16.msra.mxu0 %v699
    %952 = vmatpush.bf16.msra.mxu0 %v695
    %953 = vmatpush.bf16.msra.mxu0 %v691
    %954 = vmatpush.bf16.msra.mxu0 %v687
    %955 = vmatpush.bf16.msra.mxu0 %v683
    %956 = vmatpush.bf16.msra.mxu0 %v679
    %957 = vmatpush.bf16.msra.mxu0 %v675
    %958 = vmatmul.bf16.gmra.mxu0 %v86
    %v959 = vpop.f32.mrf.mxu0
    %v960 = vadd.f32 %v946, %v959
    %v961 = vpop.f32.mrf.mxu0
    %v962 = vadd.f32 %v948, %v961
    %963 = vdwg.mxu0
    %964 = vmatpush.bf16.msra.mxu0 %v735
    %965 = vmatpush.bf16.msra.mxu0 %v731
    %966 = vmatpush.bf16.msra.mxu0 %v727
    %967 = vmatpush.bf16.msra.mxu0 %v723
    %968 = vmatpush.bf16.msra.mxu0 %v719
    %969 = vmatpush.bf16.msra.mxu0 %v715
    %970 = vmatpush.bf16.msra.mxu0 %v711
    %971 = vmatpush.bf16.msra.mxu0 %v707
    %972 = vmatmul.bf16.gmra.mxu0 %v87
    %v973 = vpop.f32.mrf.mxu0
    %v974 = vadd.f32 %v960, %v973
    %v975 = vpop.f32.mrf.mxu0
    %v976 = vadd.f32 %v962, %v975
    %977 = vdwg.mxu0
    %978 = vmatpush.bf16.msra.mxu0 %v640
    %979 = vmatpush.bf16.msra.mxu0 %v636
    %980 = vmatpush.bf16.msra.mxu0 %v632
    %981 = vmatpush.bf16.msra.mxu0 %v628
    %982 = vmatpush.bf16.msra.mxu0 %v624
    %983 = vmatpush.bf16.msra.mxu0 %v620
    %984 = vmatpush.bf16.msra.mxu0 %v616
    %985 = vmatpush.bf16.msra.mxu0 %v612
    %986 = vmatmul.bf16.gmra.mxu0 %v84
    %v987 = vpop.f32.mrf.mxu0
    %v988 = vadd.f32 %v220, %v987
    %v989 = vpop.f32.mrf.mxu0
    %v990 = vadd.f32 %v220, %v989
    %991 = vdwg.mxu0
    %992 = vmatpush.bf16.msra.mxu0 %v672
    %993 = vmatpush.bf16.msra.mxu0 %v668
    %994 = vmatpush.bf16.msra.mxu0 %v664
    %995 = vmatpush.bf16.msra.mxu0 %v660
    %996 = vmatpush.bf16.msra.mxu0 %v656
    %997 = vmatpush.bf16.msra.mxu0 %v652
    %998 = vmatpush.bf16.msra.mxu0 %v648
    %999 = vmatpush.bf16.msra.mxu0 %v644
    %1000 = vmatmul.bf16.gmra.mxu0 %v85
    %v1001 = vpop.f32.mrf.mxu0
    %v1002 = vadd.f32 %v988, %v1001
    %v1003 = vpop.f32.mrf.mxu0
    %v1004 = vadd.f32 %v990, %v1003
    %1005 = vdwg.mxu0
    %1006 = vmatpush.bf16.msra.mxu0 %v704
    %1007 = vmatpush.bf16.msra.mxu0 %v700
    %1008 = vmatpush.bf16.msra.mxu0 %v696
    %1009 = vmatpush.bf16.msra.mxu0 %v692
    %1010 = vmatpush.bf16.msra.mxu0 %v688
    %1011 = vmatpush.bf16.msra.mxu0 %v684
    %1012 = vmatpush.bf16.msra.mxu0 %v680
    %1013 = vmatpush.bf16.msra.mxu0 %v676
    %1014 = vmatmul.bf16.gmra.mxu0 %v86
    %v1015 = vpop.f32.mrf.mxu0
    %v1016 = vadd.f32 %v1002, %v1015
    %v1017 = vpop.f32.mrf.mxu0
    %v1018 = vadd.f32 %v1004, %v1017
    %1019 = vdwg.mxu0
    %1020 = vmatpush.bf16.msra.mxu0 %v736
    %1021 = vmatpush.bf16.msra.mxu0 %v732
    %1022 = vmatpush.bf16.msra.mxu0 %v728
    %1023 = vmatpush.bf16.msra.mxu0 %v724
    %1024 = vmatpush.bf16.msra.mxu0 %v720
    %1025 = vmatpush.bf16.msra.mxu0 %v716
    %1026 = vmatpush.bf16.msra.mxu0 %v712
    %1027 = vmatpush.bf16.msra.mxu0 %v708
    %1028 = vmatmul.bf16.gmra.mxu0 %v87
    %v1029 = vpop.f32.mrf.mxu0
    %v1030 = vadd.f32 %v1016, %v1029
    %v1031 = vpop.f32.mrf.mxu0
    %v1032 = vadd.f32 %v1018, %v1031
    %1033 = vdwg.mxu0
    %1034 = vmatpush.bf16.msra.mxu0 %v641
    %1035 = vmatpush.bf16.msra.mxu0 %v637
    %1036 = vmatpush.bf16.msra.mxu0 %v633
    %1037 = vmatpush.bf16.msra.mxu0 %v629
    %1038 = vmatpush.bf16.msra.mxu0 %v625
    %1039 = vmatpush.bf16.msra.mxu0 %v621
    %1040 = vmatpush.bf16.msra.mxu0 %v617
    %1041 = vmatpush.bf16.msra.mxu0 %v613
    %1042 = vmatmul.bf16.gmra.mxu0 %v84
    %v1043 = vpop.f32.mrf.mxu0
    %v1044 = vadd.f32 %v221, %v1043
    %v1045 = vpop.f32.mrf.mxu0
    %v1046 = vadd.f32 %v221, %v1045
    %1047 = vdwg.mxu0
    %1048 = vmatpush.bf16.msra.mxu0 %v673
    %1049 = vmatpush.bf16.msra.mxu0 %v669
    %1050 = vmatpush.bf16.msra.mxu0 %v665
    %1051 = vmatpush.bf16.msra.mxu0 %v661
    %1052 = vmatpush.bf16.msra.mxu0 %v657
    %1053 = vmatpush.bf16.msra.mxu0 %v653
    %1054 = vmatpush.bf16.msra.mxu0 %v649
    %1055 = vmatpush.bf16.msra.mxu0 %v645
    %1056 = vmatmul.bf16.gmra.mxu0 %v85
    %v1057 = vpop.f32.mrf.mxu0
    %v1058 = vadd.f32 %v1044, %v1057
    %v1059 = vpop.f32.mrf.mxu0
    %v1060 = vadd.f32 %v1046, %v1059
    %1061 = vdwg.mxu0
    %1062 = vmatpush.bf16.msra.mxu0 %v705
    %1063 = vmatpush.bf16.msra.mxu0 %v701
    %1064 = vmatpush.bf16.msra.mxu0 %v697
    %1065 = vmatpush.bf16.msra.mxu0 %v693
    %1066 = vmatpush.bf16.msra.mxu0 %v689
    %1067 = vmatpush.bf16.msra.mxu0 %v685
    %1068 = vmatpush.bf16.msra.mxu0 %v681
    %1069 = vmatpush.bf16.msra.mxu0 %v677
    %1070 = vmatmul.bf16.gmra.mxu0 %v86
    %v1071 = vpop.f32.mrf.mxu0
    %v1072 = vadd.f32 %v1058, %v1071
    %v1073 = vpop.f32.mrf.mxu0
    %v1074 = vadd.f32 %v1060, %v1073
    %1075 = vdwg.mxu0
    %1076 = vmatpush.bf16.msra.mxu0 %v737
    %1077 = vmatpush.bf16.msra.mxu0 %v733
    %1078 = vmatpush.bf16.msra.mxu0 %v729
    %1079 = vmatpush.bf16.msra.mxu0 %v725
    %1080 = vmatpush.bf16.msra.mxu0 %v721
    %1081 = vmatpush.bf16.msra.mxu0 %v717
    %1082 = vmatpush.bf16.msra.mxu0 %v713
    %1083 = vmatpush.bf16.msra.mxu0 %v709
    %1084 = vmatmul.bf16.gmra.mxu0 %v87
    %v1085 = vpop.f32.mrf.mxu0
    %v1086 = vadd.f32 %v1072, %v1085
    %v1087 = vpop.f32.mrf.mxu0
    %v1088 = vadd.f32 %v1074, %v1087
    %1089 = vdwg.mxu0
    %v1090 = vmax.f32 %v918, 0.0
    %v1091 = vmax.f32 %v974, 0.0
    %v1092 = vmax.f32 %v1030, 0.0
    %v1093 = vmax.f32 %v1086, 0.0
    %v1094 = vmax.f32 %v920, 0.0
    %v1095 = vmax.f32 %v976, 0.0
    %v1096 = vmax.f32 %v1032, 0.0
    %v1097 = vmax.f32 %v1088, 0.0
    %v1098 = vpack.c.bf16 %v1094, %v1090
    %v1099 = vpack.c.bf16 %v1095, %v1091
    %v1100 = vpack.c.bf16 %v1096, %v1092
    %v1101 = vpack.c.bf16 %v1097, %v1093
    %v1102 = vld [vmem:[#allocation4] sm:$0xff]
    %v1103 = vld [vmem:[#allocation4 + $0x8] sm:$0xff]
    %v1104 = vld [vmem:[#allocation4 + $0x10] sm:$0xff]
    %v1105 = vld [vmem:[#allocation4 + $0x18] sm:$0xff]
    %v1106 = vld [vmem:[#allocation4 + $0x20] sm:$0xff]
    %v1107 = vld [vmem:[#allocation4 + $0x28] sm:$0xff]
    %v1108 = vld [vmem:[#allocation4 + $0x30] sm:$0xff]
    %v1109 = vld [vmem:[#allocation4 + $0x38] sm:$0xff]
    %v1110 = vld [vmem:[#allocation4 + $0x40] sm:$0xff]
    %v1111 = vld [vmem:[#allocation4 + $0x48] sm:$0xff]
    %v1112 = vld [vmem:[#allocation4 + $0x50] sm:$0xff]
    %v1113 = vld [vmem:[#allocation4 + $0x58] sm:$0xff]
    %v1114 = vld [vmem:[#allocation4 + $0x60] sm:$0xff]
    %v1115 = vld [vmem:[#allocation4 + $0x68] sm:$0xff]
    %v1116 = vld [vmem:[#allocation4 + $0x70] sm:$0xff]
    %v1117 = vld [vmem:[#allocation4 + $0x78] sm:$0xff]
    %v1118 = vld [vmem:[#allocation4 + $0x80] sm:$0xff]
    %v1119 = vld [vmem:[#allocation4 + $0x88] sm:$0xff]
    %v1120 = vld [vmem:[#allocation4 + $0x90] sm:$0xff]
    %v1121 = vld [vmem:[#allocation4 + $0x98] sm:$0xff]
    %v1122 = vld [vmem:[#allocation4 + $0xa0] sm:$0xff]
    %v1123 = vld [vmem:[#allocation4 + $0xa8] sm:$0xff]
    %v1124 = vld [vmem:[#allocation4 + $0xb0] sm:$0xff]
    %v1125 = vld [vmem:[#allocation4 + $0xb8] sm:$0xff]
    %v1126 = vld [vmem:[#allocation4 + $0xc0] sm:$0xff]
    %v1127 = vld [vmem:[#allocation4 + $0xc8] sm:$0xff]
    %v1128 = vld [vmem:[#allocation4 + $0xd0] sm:$0xff]
    %v1129 = vld [vmem:[#allocation4 + $0xd8] sm:$0xff]
    %v1130 = vld [vmem:[#allocation4 + $0xe0] sm:$0xff]
    %v1131 = vld [vmem:[#allocation4 + $0xe8] sm:$0xff]
    %v1132 = vld [vmem:[#allocation4 + $0xf0] sm:$0xff]
    %v1133 = vld [vmem:[#allocation4 + $0xf8] sm:$0xff]
    %v1134 = vld [vmem:[#allocation4 + $0x100] sm:$0xff]
    %v1135 = vld [vmem:[#allocation4 + $0x108] sm:$0xff]
    %v1136 = vld [vmem:[#allocation4 + $0x110] sm:$0xff]
    %v1137 = vld [vmem:[#allocation4 + $0x118] sm:$0xff]
    %v1138 = vld [vmem:[#allocation4 + $0x120] sm:$0xff]
    %v1139 = vld [vmem:[#allocation4 + $0x128] sm:$0xff]
    %v1140 = vld [vmem:[#allocation4 + $0x130] sm:$0xff]
    %v1141 = vld [vmem:[#allocation4 + $0x138] sm:$0xff]
    %v1142 = vld [vmem:[#allocation4 + $0x140] sm:$0xff]
    %v1143 = vld [vmem:[#allocation4 + $0x148] sm:$0xff]
    %v1144 = vld [vmem:[#allocation4 + $0x150] sm:$0xff]
    %v1145 = vld [vmem:[#allocation4 + $0x158] sm:$0xff]
    %v1146 = vld [vmem:[#allocation4 + $0x160] sm:$0xff]
    %v1147 = vld [vmem:[#allocation4 + $0x168] sm:$0xff]
    %v1148 = vld [vmem:[#allocation4 + $0x170] sm:$0xff]
    %v1149 = vld [vmem:[#allocation4 + $0x178] sm:$0xff]
    %v1150 = vld [vmem:[#allocation4 + $0x180] sm:$0xff]
    %v1151 = vld [vmem:[#allocation4 + $0x188] sm:$0xff]
    %v1152 = vld [vmem:[#allocation4 + $0x190] sm:$0xff]
    %v1153 = vld [vmem:[#allocation4 + $0x198] sm:$0xff]
    %v1154 = vld [vmem:[#allocation4 + $0x1a0] sm:$0xff]
    %v1155 = vld [vmem:[#allocation4 + $0x1a8] sm:$0xff]
    %v1156 = vld [vmem:[#allocation4 + $0x1b0] sm:$0xff]
    %v1157 = vld [vmem:[#allocation4 + $0x1b8] sm:$0xff]
    %v1158 = vld [vmem:[#allocation4 + $0x1c0] sm:$0xff]
    %v1159 = vld [vmem:[#allocation4 + $0x1c8] sm:$0xff]
    %v1160 = vld [vmem:[#allocation4 + $0x1d0] sm:$0xff]
    %v1161 = vld [vmem:[#allocation4 + $0x1d8] sm:$0xff]
    %v1162 = vld [vmem:[#allocation4 + $0x1e0] sm:$0xff]
    %v1163 = vld [vmem:[#allocation4 + $0x1e8] sm:$0xff]
    %v1164 = vld [vmem:[#allocation4 + $0x1f0] sm:$0xff]
    %v1165 = vld [vmem:[#allocation4 + $0x1f8] sm:$0xff]
    %v1166 = vld [vmem:[%s4] sm:$0x3]
    %v1168 = vperm.slane %v1166, 0
    %v1169 = vperm.slane %v1166, 1
    %v1236 = vunpack.c.l.b16 %v1102
    %v1237 = vunpack.c.h.b16 %v1102
    %v1238 = vunpack.c.l.b16 %v1103
    %v1239 = vunpack.c.h.b16 %v1103
    %v1240 = vunpack.c.l.b16 %v1104
    %v1241 = vunpack.c.h.b16 %v1104
    %v1242 = vunpack.c.l.b16 %v1105
    %v1243 = vunpack.c.h.b16 %v1105
    %v1244 = vunpack.c.l.b16 %v1106
    %v1245 = vunpack.c.h.b16 %v1106
    %v1246 = vunpack.c.l.b16 %v1107
    %v1247 = vunpack.c.h.b16 %v1107
    %v1248 = vunpack.c.l.b16 %v1108
    %v1249 = vunpack.c.h.b16 %v1108
    %v1250 = vunpack.c.l.b16 %v1109
    %v1251 = vunpack.c.h.b16 %v1109
    %v1252 = vunpack.c.l.b16 %v1110
    %v1253 = vunpack.c.h.b16 %v1110
    %v1254 = vunpack.c.l.b16 %v1111
    %v1255 = vunpack.c.h.b16 %v1111
    %v1256 = vunpack.c.l.b16 %v1112
    %v1257 = vunpack.c.h.b16 %v1112
    %v1258 = vunpack.c.l.b16 %v1113
    %v1259 = vunpack.c.h.b16 %v1113
    %v1260 = vunpack.c.l.b16 %v1114
    %v1261 = vunpack.c.h.b16 %v1114
    %v1262 = vunpack.c.l.b16 %v1115
    %v1263 = vunpack.c.h.b16 %v1115
    %v1264 = vunpack.c.l.b16 %v1116
    %v1265 = vunpack.c.h.b16 %v1116
    %v1266 = vunpack.c.l.b16 %v1117
    %v1267 = vunpack.c.h.b16 %v1117
    %v1268 = vunpack.c.l.b16 %v1118
    %v1269 = vunpack.c.h.b16 %v1118
    %v1270 = vunpack.c.l.b16 %v1119
    %v1271 = vunpack.c.h.b16 %v1119
    %v1272 = vunpack.c.l.b16 %v1120
    %v1273 = vunpack.c.h.b16 %v1120
    %v1274 = vunpack.c.l.b16 %v1121
    %v1275 = vunpack.c.h.b16 %v1121
    %v1276 = vunpack.c.l.b16 %v1122
    %v1277 = vunpack.c.h.b16 %v1122
    %v1278 = vunpack.c.l.b16 %v1123
    %v1279 = vunpack.c.h.b16 %v1123
    %v1280 = vunpack.c.l.b16 %v1124
    %v1281 = vunpack.c.h.b16 %v1124
    %v1282 = vunpack.c.l.b16 %v1125
    %v1283 = vunpack.c.h.b16 %v1125
    %v1284 = vunpack.c.l.b16 %v1126
    %v1285 = vunpack.c.h.b16 %v1126
    %v1286 = vunpack.c.l.b16 %v1127
    %v1287 = vunpack.c.h.b16 %v1127
    %v1288 = vunpack.c.l.b16 %v1128
    %v1289 = vunpack.c.h.b16 %v1128
    %v1290 = vunpack.c.l.b16 %v1129
    %v1291 = vunpack.c.h.b16 %v1129
    %v1292 = vunpack.c.l.b16 %v1130
    %v1293 = vunpack.c.h.b16 %v1130
    %v1294 = vunpack.c.l.b16 %v1131
    %v1295 = vunpack.c.h.b16 %v1131
    %v1296 = vunpack.c.l.b16 %v1132
    %v1297 = vunpack.c.h.b16 %v1132
    %v1298 = vunpack.c.l.b16 %v1133
    %v1299 = vunpack.c.h.b16 %v1133
    %v1300 = vunpack.c.l.b16 %v1134
    %v1301 = vunpack.c.h.b16 %v1134
    %v1302 = vunpack.c.l.b16 %v1135
    %v1303 = vunpack.c.h.b16 %v1135
    %v1304 = vunpack.c.l.b16 %v1136
    %v1305 = vunpack.c.h.b16 %v1136
    %v1306 = vunpack.c.l.b16 %v1137
    %v1307 = vunpack.c.h.b16 %v1137
    %v1308 = vunpack.c.l.b16 %v1138
    %v1309 = vunpack.c.h.b16 %v1138
    %v1310 = vunpack.c.l.b16 %v1139
    %v1311 = vunpack.c.h.b16 %v1139
    %v1312 = vunpack.c.l.b16 %v1140
    %v1313 = vunpack.c.h.b16 %v1140
    %v1314 = vunpack.c.l.b16 %v1141
    %v1315 = vunpack.c.h.b16 %v1141
    %v1316 = vunpack.c.l.b16 %v1142
    %v1317 = vunpack.c.h.b16 %v1142
    %v1318 = vunpack.c.l.b16 %v1143
    %v1319 = vunpack.c.h.b16 %v1143
    %v1320 = vunpack.c.l.b16 %v1144
    %v1321 = vunpack.c.h.b16 %v1144
    %v1322 = vunpack.c.l.b16 %v1145
    %v1323 = vunpack.c.h.b16 %v1145
    %v1324 = vunpack.c.l.b16 %v1146
    %v1325 = vunpack.c.h.b16 %v1146
    %v1326 = vunpack.c.l.b16 %v1147
    %v1327 = vunpack.c.h.b16 %v1147
    %v1328 = vunpack.c.l.b16 %v1148
    %v1329 = vunpack.c.h.b16 %v1148
    %v1330 = vunpack.c.l.b16 %v1149
    %v1331 = vunpack.c.h.b16 %v1149
    %v1332 = vunpack.c.l.b16 %v1150
    %v1333 = vunpack.c.h.b16 %v1150
    %v1334 = vunpack.c.l.b16 %v1151
    %v1335 = vunpack.c.h.b16 %v1151
    %v1336 = vunpack.c.l.b16 %v1152
    %v1337 = vunpack.c.h.b16 %v1152
    %v1338 = vunpack.c.l.b16 %v1153
    %v1339 = vunpack.c.h.b16 %v1153
    %v1340 = vunpack.c.l.b16 %v1154
    %v1341 = vunpack.c.h.b16 %v1154
    %v1342 = vunpack.c.l.b16 %v1155
    %v1343 = vunpack.c.h.b16 %v1155
    %v1344 = vunpack.c.l.b16 %v1156
    %v1345 = vunpack.c.h.b16 %v1156
    %v1346 = vunpack.c.l.b16 %v1157
    %v1347 = vunpack.c.h.b16 %v1157
    %v1348 = vunpack.c.l.b16 %v1158
    %v1349 = vunpack.c.h.b16 %v1158
    %v1350 = vunpack.c.l.b16 %v1159
    %v1351 = vunpack.c.h.b16 %v1159
    %v1352 = vunpack.c.l.b16 %v1160
    %v1353 = vunpack.c.h.b16 %v1160
    %v1354 = vunpack.c.l.b16 %v1161
    %v1355 = vunpack.c.h.b16 %v1161
    %v1356 = vunpack.c.l.b16 %v1162
    %v1357 = vunpack.c.h.b16 %v1162
    %v1358 = vunpack.c.l.b16 %v1163
    %v1359 = vunpack.c.h.b16 %v1163
    %v1360 = vunpack.c.l.b16 %v1164
    %v1361 = vunpack.c.h.b16 %v1164
    %v1362 = vunpack.c.l.b16 %v1165
    %v1363 = vunpack.c.h.b16 %v1165
    %v1364 = vpack.c.b16 %v1238, %v1236
    %v1365 = vpack.c.b16 %v1239, %v1237
    %v1366 = vpack.c.b16 %v1242, %v1240
    %v1367 = vpack.c.b16 %v1243, %v1241
    %v1368 = vpack.c.b16 %v1246, %v1244
    %v1369 = vpack.c.b16 %v1247, %v1245
    %v1370 = vpack.c.b16 %v1250, %v1248
    %v1371 = vpack.c.b16 %v1251, %v1249
    %v1372 = vpack.c.b16 %v1254, %v1252
    %v1373 = vpack.c.b16 %v1255, %v1253
    %v1374 = vpack.c.b16 %v1258, %v1256
    %v1375 = vpack.c.b16 %v1259, %v1257
    %v1376 = vpack.c.b16 %v1262, %v1260
    %v1377 = vpack.c.b16 %v1263, %v1261
    %v1378 = vpack.c.b16 %v1266, %v1264
    %v1379 = vpack.c.b16 %v1267, %v1265
    %v1380 = vpack.c.b16 %v1270, %v1268
    %v1381 = vpack.c.b16 %v1271, %v1269
    %v1382 = vpack.c.b16 %v1274, %v1272
    %v1383 = vpack.c.b16 %v1275, %v1273
    %v1384 = vpack.c.b16 %v1278, %v1276
    %v1385 = vpack.c.b16 %v1279, %v1277
    %v1386 = vpack.c.b16 %v1282, %v1280
    %v1387 = vpack.c.b16 %v1283, %v1281
    %v1388 = vpack.c.b16 %v1286, %v1284
    %v1389 = vpack.c.b16 %v1287, %v1285
    %v1390 = vpack.c.b16 %v1290, %v1288
    %v1391 = vpack.c.b16 %v1291, %v1289
    %v1392 = vpack.c.b16 %v1294, %v1292
    %v1393 = vpack.c.b16 %v1295, %v1293
    %v1394 = vpack.c.b16 %v1298, %v1296
    %v1395 = vpack.c.b16 %v1299, %v1297
    %v1396 = vpack.c.b16 %v1302, %v1300
    %v1397 = vpack.c.b16 %v1303, %v1301
    %v1398 = vpack.c.b16 %v1306, %v1304
    %v1399 = vpack.c.b16 %v1307, %v1305
    %v1400 = vpack.c.b16 %v1310, %v1308
    %v1401 = vpack.c.b16 %v1311, %v1309
    %v1402 = vpack.c.b16 %v1314, %v1312
    %v1403 = vpack.c.b16 %v1315, %v1313
    %v1404 = vpack.c.b16 %v1318, %v1316
    %v1405 = vpack.c.b16 %v1319, %v1317
    %v1406 = vpack.c.b16 %v1322, %v1320
    %v1407 = vpack.c.b16 %v1323, %v1321
    %v1408 = vpack.c.b16 %v1326, %v1324
    %v1409 = vpack.c.b16 %v1327, %v1325
    %v1410 = vpack.c.b16 %v1330, %v1328
    %v1411 = vpack.c.b16 %v1331, %v1329
    %v1412 = vpack.c.b16 %v1334, %v1332
    %v1413 = vpack.c.b16 %v1335, %v1333
    %v1414 = vpack.c.b16 %v1338, %v1336
    %v1415 = vpack.c.b16 %v1339, %v1337
    %v1416 = vpack.c.b16 %v1342, %v1340
    %v1417 = vpack.c.b16 %v1343, %v1341
    %v1418 = vpack.c.b16 %v1346, %v1344
    %v1419 = vpack.c.b16 %v1347, %v1345
    %v1420 = vpack.c.b16 %v1350, %v1348
    %v1421 = vpack.c.b16 %v1351, %v1349
    %v1422 = vpack.c.b16 %v1354, %v1352
    %v1423 = vpack.c.b16 %v1355, %v1353
    %v1424 = vpack.c.b16 %v1358, %v1356
    %v1425 = vpack.c.b16 %v1359, %v1357
    %v1426 = vpack.c.b16 %v1362, %v1360
    %v1427 = vpack.c.b16 %v1363, %v1361
    %1492 = vmatpush.bf16.msra.mxu0 %v1378
    %1493 = vmatpush.bf16.msra.mxu0 %v1376
    %1494 = vmatpush.bf16.msra.mxu0 %v1374
    %1495 = vmatpush.bf16.msra.mxu0 %v1372
    %1496 = vmatpush.bf16.msra.mxu0 %v1370
    %1497 = vmatpush.bf16.msra.mxu0 %v1368
    %1498 = vmatpush.bf16.msra.mxu0 %v1366
    %1499 = vmatpush.bf16.msra.mxu0 %v1364
    %1500 = vmatmul.bf16.gmra.mxu0 %v1098
    %v1501 = vpop.f32.mrf.mxu0
    %v1502 = vadd.f32 %v1168, %v1501
    %v1503 = vpop.f32.mrf.mxu0
    %v1504 = vadd.f32 %v1168, %v1503
    %1505 = vdwg.mxu0
    %1506 = vmatpush.bf16.msra.mxu0 %v1394
    %1507 = vmatpush.bf16.msra.mxu0 %v1392
    %1508 = vmatpush.bf16.msra.mxu0 %v1390
    %1509 = vmatpush.bf16.msra.mxu0 %v1388
    %1510 = vmatpush.bf16.msra.mxu0 %v1386
    %1511 = vmatpush.bf16.msra.mxu0 %v1384
    %1512 = vmatpush.bf16.msra.mxu0 %v1382
    %1513 = vmatpush.bf16.msra.mxu0 %v1380
    %1514 = vmatmul.bf16.gmra.mxu0 %v1099
    %v1515 = vpop.f32.mrf.mxu0
    %v1516 = vadd.f32 %v1502, %v1515
    %v1517 = vpop.f32.mrf.mxu0
    %v1518 = vadd.f32 %v1504, %v1517
    %1519 = vdwg.mxu0
    %1520 = vmatpush.bf16.msra.mxu0 %v1410
    %1521 = vmatpush.bf16.msra.mxu0 %v1408
    %1522 = vmatpush.bf16.msra.mxu0 %v1406
    %1523 = vmatpush.bf16.msra.mxu0 %v1404
    %1524 = vmatpush.bf16.msra.mxu0 %v1402
    %1525 = vmatpush.bf16.msra.mxu0 %v1400
    %1526 = vmatpush.bf16.msra.mxu0 %v1398
    %1527 = vmatpush.bf16.msra.mxu0 %v1396
    %1528 = vmatmul.bf16.gmra.mxu0 %v1100
    %v1529 = vpop.f32.mrf.mxu0
    %v1530 = vadd.f32 %v1516, %v1529
    %v1531 = vpop.f32.mrf.mxu0
    %v1532 = vadd.f32 %v1518, %v1531
    %1533 = vdwg.mxu0
    %1534 = vmatpush.bf16.msra.mxu0 %v1426
    %1535 = vmatpush.bf16.msra.mxu0 %v1424
    %1536 = vmatpush.bf16.msra.mxu0 %v1422
    %1537 = vmatpush.bf16.msra.mxu0 %v1420
    %1538 = vmatpush.bf16.msra.mxu0 %v1418
    %1539 = vmatpush.bf16.msra.mxu0 %v1416
    %1540 = vmatpush.bf16.msra.mxu0 %v1414
    %1541 = vmatpush.bf16.msra.mxu0 %v1412
    %1542 = vmatmul.bf16.gmra.mxu0 %v1101
    %v1543 = vpop.f32.mrf.mxu0
    %v1544 = vadd.f32 %v1530, %v1543
    %v1545 = vpop.f32.mrf.mxu0
    %v1546 = vadd.f32 %v1532, %v1545
    %1547 = vdwg.mxu0
    %1548 = vmatpush.bf16.msra.mxu0 %v1379
    %1549 = vmatpush.bf16.msra.mxu0 %v1377
    %1550 = vmatpush.bf16.msra.mxu0 %v1375
    %1551 = vmatpush.bf16.msra.mxu0 %v1373
    %1552 = vmatpush.bf16.msra.mxu0 %v1371
    %1553 = vmatpush.bf16.msra.mxu0 %v1369
    %1554 = vmatpush.bf16.msra.mxu0 %v1367
    %1555 = vmatpush.bf16.msra.mxu0 %v1365
    %1556 = vmatmul.bf16.gmra.mxu0 %v1098
    %v1557 = vpop.f32.mrf.mxu0
    %v1558 = vadd.f32 %v1169, %v1557
    %v1559 = vpop.f32.mrf.mxu0
    %v1560 = vadd.f32 %v1169, %v1559
    %1561 = vdwg.mxu0
    %1562 = vmatpush.bf16.msra.mxu0 %v1395
    %1563 = vmatpush.bf16.msra.mxu0 %v1393
    %1564 = vmatpush.bf16.msra.mxu0 %v1391
    %1565 = vmatpush.bf16.msra.mxu0 %v1389
    %1566 = vmatpush.bf16.msra.mxu0 %v1387
    %1567 = vmatpush.bf16.msra.mxu0 %v1385
    %1568 = vmatpush.bf16.msra.mxu0 %v1383
    %1569 = vmatpush.bf16.msra.mxu0 %v1381
    %1570 = vmatmul.bf16.gmra.mxu0 %v1099
    %v1571 = vpop.f32.mrf.mxu0
    %v1572 = vadd.f32 %v1558, %v1571
    %v1573 = vpop.f32.mrf.mxu0
    %v1574 = vadd.f32 %v1560, %v1573
    %1575 = vdwg.mxu0
    %1576 = vmatpush.bf16.msra.mxu0 %v1411
    %1577 = vmatpush.bf16.msra.mxu0 %v1409
    %1578 = vmatpush.bf16.msra.mxu0 %v1407
    %1579 = vmatpush.bf16.msra.mxu0 %v1405
    %1580 = vmatpush.bf16.msra.mxu0 %v1403
    %1581 = vmatpush.bf16.msra.mxu0 %v1401
    %1582 = vmatpush.bf16.msra.mxu0 %v1399
    %1583 = vmatpush.bf16.msra.mxu0 %v1397
    %1584 = vmatmul.bf16.gmra.mxu0 %v1100
    %v1585 = vpop.f32.mrf.mxu0
    %v1586 = vadd.f32 %v1572, %v1585
    %v1587 = vpop.f32.mrf.mxu0
    %v1588 = vadd.f32 %v1574, %v1587
    %1589 = vdwg.mxu0
    %1590 = vmatpush.bf16.msra.mxu0 %v1427
    %1591 = vmatpush.bf16.msra.mxu0 %v1425
    %1592 = vmatpush.bf16.msra.mxu0 %v1423
    %1593 = vmatpush.bf16.msra.mxu0 %v1421
    %1594 = vmatpush.bf16.msra.mxu0 %v1419
    %1595 = vmatpush.bf16.msra.mxu0 %v1417
    %1596 = vmatpush.bf16.msra.mxu0 %v1415
    %1597 = vmatpush.bf16.msra.mxu0 %v1413
    %1598 = vmatmul.bf16.gmra.mxu0 %v1101
    %v1599 = vpop.f32.mrf.mxu0
    %v1600 = vadd.f32 %v1586, %v1599
    %v1601 = vpop.f32.mrf.mxu0
    %v1602 = vadd.f32 %v1588, %v1601
    %1603 = vdwg.mxu0
    %v1604 = vmax.f32 %v1544, 0.0
    %v1605 = vmax.f32 %v1600, 0.0
    %v1606 = vmax.f32 %v1546, 0.0
    %v1607 = vmax.f32 %v1602, 0.0
    %v1608 = vpack.c.bf16 %v1606, %v1604
    %v1609 = vpack.c.bf16 %v1607, %v1605
    %v1610 = vld [vmem:[#allocation6] sm:$0xff]
    %v1611 = vld [vmem:[#allocation6 + $0x8] sm:$0xff]
    %v1612 = vld [vmem:[#allocation6 + $0x10] sm:$0xff]
    %v1613 = vld [vmem:[#allocation6 + $0x18] sm:$0xff]
    %v1614 = vld [vmem:[#allocation6 + $0x20] sm:$0xff]
    %v1615 = vld [vmem:[#allocation6 + $0x28] sm:$0xff]
    %v1616 = vld [vmem:[#allocation6 + $0x30] sm:$0xff]
    %v1617 = vld [vmem:[#allocation6 + $0x38] sm:$0xff]
    %v1618 = vld [vmem:[#allocation6 + $0x40] sm:$0xff]
    %v1619 = vld [vmem:[#allocation6 + $0x48] sm:$0xff]
    %v1620 = vld [vmem:[#allocation6 + $0x50] sm:$0xff]
    %v1621 = vld [vmem:[#allocation6 + $0x58] sm:$0xff]
    %v1622 = vld [vmem:[#allocation6 + $0x60] sm:$0xff]
    %v1623 = vld [vmem:[#allocation6 + $0x68] sm:$0xff]
    %v1624 = vld [vmem:[#allocation6 + $0x70] sm:$0xff]
    %v1625 = vld [vmem:[#allocation6 + $0x78] sm:$0xff]
    %v1626 = vld [vmem:[#allocation6 + $0x80] sm:$0xff]
    %v1627 = vld [vmem:[#allocation6 + $0x88] sm:$0xff]
    %v1628 = vld [vmem:[#allocation6 + $0x90] sm:$0xff]
    %v1629 = vld [vmem:[#allocation6 + $0x98] sm:$0xff]
    %v1630 = vld [vmem:[#allocation6 + $0xa0] sm:$0xff]
    %v1631 = vld [vmem:[#allocation6 + $0xa8] sm:$0xff]
    %v1632 = vld [vmem:[#allocation6 + $0xb0] sm:$0xff]
    %v1633 = vld [vmem:[#allocation6 + $0xb8] sm:$0xff]
    %v1634 = vld [vmem:[#allocation6 + $0xc0] sm:$0xff]
    %v1635 = vld [vmem:[#allocation6 + $0xc8] sm:$0xff]
    %v1636 = vld [vmem:[#allocation6 + $0xd0] sm:$0xff]
    %v1637 = vld [vmem:[#allocation6 + $0xd8] sm:$0xff]
    %v1638 = vld [vmem:[#allocation6 + $0xe0] sm:$0xff]
    %v1639 = vld [vmem:[#allocation6 + $0xe8] sm:$0xff]
    %v1640 = vld [vmem:[#allocation6 + $0xf0] sm:$0xff]
    %v1641 = vld [vmem:[#allocation6 + $0xf8] sm:$0xff]
    %v1642 = vld [vmem:[%s6] sm:$0x3]
    %v1644 = vperm.slane %v1642, 0
    %v1645 = vperm.slane %v1642, 1
    %v1680 = vunpack.c.l.b16 %v1610
    %v1681 = vunpack.c.h.b16 %v1610
    %v1682 = vunpack.c.l.b16 %v1611
    %v1683 = vunpack.c.h.b16 %v1611
    %v1684 = vunpack.c.l.b16 %v1612
    %v1685 = vunpack.c.h.b16 %v1612
    %v1686 = vunpack.c.l.b16 %v1613
    %v1687 = vunpack.c.h.b16 %v1613
    %v1688 = vunpack.c.l.b16 %v1614
    %v1689 = vunpack.c.h.b16 %v1614
    %v1690 = vunpack.c.l.b16 %v1615
    %v1691 = vunpack.c.h.b16 %v1615
    %v1692 = vunpack.c.l.b16 %v1616
    %v1693 = vunpack.c.h.b16 %v1616
    %v1694 = vunpack.c.l.b16 %v1617
    %v1695 = vunpack.c.h.b16 %v1617
    %v1696 = vunpack.c.l.b16 %v1618
    %v1697 = vunpack.c.h.b16 %v1618
    %v1698 = vunpack.c.l.b16 %v1619
    %v1699 = vunpack.c.h.b16 %v1619
    %v1700 = vunpack.c.l.b16 %v1620
    %v1701 = vunpack.c.h.b16 %v1620
    %v1702 = vunpack.c.l.b16 %v1621
    %v1703 = vunpack.c.h.b16 %v1621
    %v1704 = vunpack.c.l.b16 %v1622
    %v1705 = vunpack.c.h.b16 %v1622
    %v1706 = vunpack.c.l.b16 %v1623
    %v1707 = vunpack.c.h.b16 %v1623
    %v1708 = vunpack.c.l.b16 %v1624
    %v1709 = vunpack.c.h.b16 %v1624
    %v1710 = vunpack.c.l.b16 %v1625
    %v1711 = vunpack.c.h.b16 %v1625
    %v1712 = vunpack.c.l.b16 %v1626
    %v1713 = vunpack.c.h.b16 %v1626
    %v1714 = vunpack.c.l.b16 %v1627
    %v1715 = vunpack.c.h.b16 %v1627
    %v1716 = vunpack.c.l.b16 %v1628
    %v1717 = vunpack.c.h.b16 %v1628
    %v1718 = vunpack.c.l.b16 %v1629
    %v1719 = vunpack.c.h.b16 %v1629
    %v1720 = vunpack.c.l.b16 %v1630
    %v1721 = vunpack.c.h.b16 %v1630
    %v1722 = vunpack.c.l.b16 %v1631
    %v1723 = vunpack.c.h.b16 %v1631
    %v1724 = vunpack.c.l.b16 %v1632
    %v1725 = vunpack.c.h.b16 %v1632
    %v1726 = vunpack.c.l.b16 %v1633
    %v1727 = vunpack.c.h.b16 %v1633
    %v1728 = vunpack.c.l.b16 %v1634
    %v1729 = vunpack.c.h.b16 %v1634
    %v1730 = vunpack.c.l.b16 %v1635
    %v1731 = vunpack.c.h.b16 %v1635
    %v1732 = vunpack.c.l.b16 %v1636
    %v1733 = vunpack.c.h.b16 %v1636
    %v1734 = vunpack.c.l.b16 %v1637
    %v1735 = vunpack.c.h.b16 %v1637
    %v1736 = vunpack.c.l.b16 %v1638
    %v1737 = vunpack.c.h.b16 %v1638
    %v1738 = vunpack.c.l.b16 %v1639
    %v1739 = vunpack.c.h.b16 %v1639
    %v1740 = vunpack.c.l.b16 %v1640
    %v1741 = vunpack.c.h.b16 %v1640
    %v1742 = vunpack.c.l.b16 %v1641
    %v1743 = vunpack.c.h.b16 %v1641
    %v1744 = vpack.c.b16 %v1682, %v1680
    %v1745 = vpack.c.b16 %v1683, %v1681
    %v1746 = vpack.c.b16 %v1686, %v1684
    %v1747 = vpack.c.b16 %v1687, %v1685
    %v1748 = vpack.c.b16 %v1690, %v1688
    %v1749 = vpack.c.b16 %v1691, %v1689
    %v1750 = vpack.c.b16 %v1694, %v1692
    %v1751 = vpack.c.b16 %v1695, %v1693
    %v1752 = vpack.c.b16 %v1698, %v1696
    %v1753 = vpack.c.b16 %v1699, %v1697
    %v1754 = vpack.c.b16 %v1702, %v1700
    %v1755 = vpack.c.b16 %v1703, %v1701
    %v1756 = vpack.c.b16 %v1706, %v1704
    %v1757 = vpack.c.b16 %v1707, %v1705
    %v1758 = vpack.c.b16 %v1710, %v1708
    %v1759 = vpack.c.b16 %v1711, %v1709
    %v1760 = vpack.c.b16 %v1714, %v1712
    %v1761 = vpack.c.b16 %v1715, %v1713
    %v1762 = vpack.c.b16 %v1718, %v1716
    %v1763 = vpack.c.b16 %v1719, %v1717
    %v1764 = vpack.c.b16 %v1722, %v1720
    %v1765 = vpack.c.b16 %v1723, %v1721
    %v1766 = vpack.c.b16 %v1726, %v1724
    %v1767 = vpack.c.b16 %v1727, %v1725
    %v1768 = vpack.c.b16 %v1730, %v1728
    %v1769 = vpack.c.b16 %v1731, %v1729
    %v1770 = vpack.c.b16 %v1734, %v1732
    %v1771 = vpack.c.b16 %v1735, %v1733
    %v1772 = vpack.c.b16 %v1738, %v1736
    %v1773 = vpack.c.b16 %v1739, %v1737
    %v1774 = vpack.c.b16 %v1742, %v1740
    %v1775 = vpack.c.b16 %v1743, %v1741
    %1808 = vmatpush.bf16.msra.mxu0 %v1758
    %1809 = vmatpush.bf16.msra.mxu0 %v1756
    %1810 = vmatpush.bf16.msra.mxu0 %v1754
    %1811 = vmatpush.bf16.msra.mxu0 %v1752
    %1812 = vmatpush.bf16.msra.mxu0 %v1750
    %1813 = vmatpush.bf16.msra.mxu0 %v1748
    %1814 = vmatpush.bf16.msra.mxu0 %v1746
    %1815 = vmatpush.bf16.msra.mxu0 %v1744
    %1816 = vmatmul.bf16.gmra.mxu0 %v1608
    %v1817 = vpop.f32.mrf.mxu0
    %v1818 = vadd.f32 %v1644, %v1817
    %v1819 = vpop.f32.mrf.mxu0
    %v1820 = vadd.f32 %v1644, %v1819
    %1821 = vdwg.mxu0
    %1822 = vmatpush.bf16.msra.mxu0 %v1774
    %1823 = vmatpush.bf16.msra.mxu0 %v1772
    %1824 = vmatpush.bf16.msra.mxu0 %v1770
    %1825 = vmatpush.bf16.msra.mxu0 %v1768
    %1826 = vmatpush.bf16.msra.mxu0 %v1766
    %1827 = vmatpush.bf16.msra.mxu0 %v1764
    %1828 = vmatpush.bf16.msra.mxu0 %v1762
    %1829 = vmatpush.bf16.msra.mxu0 %v1760
    %1830 = vmatmul.bf16.gmra.mxu0 %v1609
    %v1831 = vpop.f32.mrf.mxu0
    %v1832 = vadd.f32 %v1818, %v1831
    %v1833 = vpop.f32.mrf.mxu0
    %v1834 = vadd.f32 %v1820, %v1833
    %1835 = vdwg.mxu0
    %1836 = vmatpush.bf16.msra.mxu0 %v1759
    %1837 = vmatpush.bf16.msra.mxu0 %v1757
    %1838 = vmatpush.bf16.msra.mxu0 %v1755
    %1839 = vmatpush.bf16.msra.mxu0 %v1753
    %1840 = vmatpush.bf16.msra.mxu0 %v1751
    %1841 = vmatpush.bf16.msra.mxu0 %v1749
    %1842 = vmatpush.bf16.msra.mxu0 %v1747
    %1843 = vmatpush.bf16.msra.mxu0 %v1745
    %1844 = vmatmul.bf16.gmra.mxu0 %v1608
    %v1845 = vpop.f32.mrf.mxu0
    %v1846 = vadd.f32 %v1645, %v1845
    %v1847 = vpop.f32.mrf.mxu0
    %v1848 = vadd.f32 %v1645, %v1847
    %1849 = vdwg.mxu0
    %1850 = vmatpush.bf16.msra.mxu0 %v1775
    %1851 = vmatpush.bf16.msra.mxu0 %v1773
    %1852 = vmatpush.bf16.msra.mxu0 %v1771
    %1853 = vmatpush.bf16.msra.mxu0 %v1769
    %1854 = vmatpush.bf16.msra.mxu0 %v1767
    %1855 = vmatpush.bf16.msra.mxu0 %v1765
    %1856 = vmatpush.bf16.msra.mxu0 %v1763
    %1857 = vmatpush.bf16.msra.mxu0 %v1761
    %1858 = vmatmul.bf16.gmra.mxu0 %v1609
    %v1859 = vpop.f32.mrf.mxu0
    %v1860 = vadd.f32 %v1846, %v1859
    %v1861 = vpop.f32.mrf.mxu0
    %v1862 = vadd.f32 %v1848, %v1861
    %1863 = vdwg.mxu0
    %v1864 = vmax.f32 %v1832, 0.0
    %v1865 = vmax.f32 %v1860, 0.0
    %v1866 = vmax.f32 %v1834, 0.0
    %v1867 = vmax.f32 %v1862, 0.0
    %v1868 = vpack.c.bf16 %v1866, %v1864
    %v1869 = vpack.c.bf16 %v1867, %v1865
    %v1870 = vld [vmem:[%s7] sm:$0xf]
    %v1871 = vld [vmem:[%s7 + $0x4] sm:$0xf]
    %v1872 = vld [vmem:[%s7 + $0x8] sm:$0xf]
    %v1873 = vld [vmem:[%s7 + $0xc] sm:$0xf]
    %v1874 = vld [vmem:[%s7 + $0x10] sm:$0xf]
    %v1875 = vld [vmem:[%s7 + $0x14] sm:$0xf]
    %v1876 = vld [vmem:[%s7 + $0x18] sm:$0xf]
    %v1877 = vld [vmem:[%s7 + $0x1c] sm:$0xf]
    %v1878 = vld [vmem:[%s7 + $0x20] sm:$0xf]
    %v1879 = vld [vmem:[%s7 + $0x24] sm:$0xf]
    %v1880 = vld [vmem:[%s7 + $0x28] sm:$0xf]
    %v1881 = vld [vmem:[%s7 + $0x2c] sm:$0xf]
    %v1882 = vld [vmem:[%s7 + $0x30] sm:$0xf]
    %v1883 = vld [vmem:[%s7 + $0x34] sm:$0xf]
    %v1884 = vld [vmem:[%s7 + $0x38] sm:$0xf]
    %v1885 = vld [vmem:[%s7 + $0x3c] sm:$0xf]
    %v1886 = vld [vmem:[%s7 + $0x40] sm:$0xf]
    %v1887 = vld [vmem:[%s7 + $0x44] sm:$0xf]
    %v1888 = vld [vmem:[%s7 + $0x48] sm:$0xf]
    %v1889 = vld [vmem:[%s7 + $0x4c] sm:$0xf]
    %v1890 = vld [vmem:[%s7 + $0x50] sm:$0xf]
    %v1891 = vld [vmem:[%s7 + $0x54] sm:$0xf]
    %v1892 = vld [vmem:[%s7 + $0x58] sm:$0xf]
    %v1893 = vld [vmem:[%s7 + $0x5c] sm:$0xf]
    %v1894 = vld [vmem:[%s7 + $0x60] sm:$0xf]
    %v1895 = vld [vmem:[%s7 + $0x64] sm:$0xf]
    %v1896 = vld [vmem:[%s7 + $0x68] sm:$0xf]
    %v1897 = vld [vmem:[%s7 + $0x6c] sm:$0xf]
    %v1898 = vld [vmem:[%s7 + $0x70] sm:$0xf]
    %v1899 = vld [vmem:[%s7 + $0x74] sm:$0xf]
    %v1900 = vld [vmem:[%s7 + $0x78] sm:$0xf]
    %v1901 = vld [vmem:[%s7 + $0x7c] sm:$0xf]
    %v1934 = vunpack.c.l.b16 %v1870
    %v1935 = vunpack.c.l.b16 %v1871
    %v1936 = vunpack.c.l.b16 %v1872
    %v1937 = vunpack.c.l.b16 %v1873
    %v1938 = vunpack.c.l.b16 %v1874
    %v1939 = vunpack.c.l.b16 %v1875
    %v1940 = vunpack.c.l.b16 %v1876
    %v1941 = vunpack.c.l.b16 %v1877
    %v1942 = vunpack.c.l.b16 %v1878
    %v1943 = vunpack.c.l.b16 %v1879
    %v1944 = vunpack.c.l.b16 %v1880
    %v1945 = vunpack.c.l.b16 %v1881
    %v1946 = vunpack.c.l.b16 %v1882
    %v1947 = vunpack.c.l.b16 %v1883
    %v1948 = vunpack.c.l.b16 %v1884
    %v1949 = vunpack.c.l.b16 %v1885
    %v1950 = vunpack.c.l.b16 %v1886
    %v1951 = vunpack.c.l.b16 %v1887
    %v1952 = vunpack.c.l.b16 %v1888
    %v1953 = vunpack.c.l.b16 %v1889
    %v1954 = vunpack.c.l.b16 %v1890
    %v1955 = vunpack.c.l.b16 %v1891
    %v1956 = vunpack.c.l.b16 %v1892
    %v1957 = vunpack.c.l.b16 %v1893
    %v1958 = vunpack.c.l.b16 %v1894
    %v1959 = vunpack.c.l.b16 %v1895
    %v1960 = vunpack.c.l.b16 %v1896
    %v1961 = vunpack.c.l.b16 %v1897
    %v1962 = vunpack.c.l.b16 %v1898
    %v1963 = vunpack.c.l.b16 %v1899
    %v1964 = vunpack.c.l.b16 %v1900
    %v1965 = vunpack.c.l.b16 %v1901
    %v1966 = vpack.c.b16 %v1935, %v1934
    %v1967 = vpack.c.b16 %v1937, %v1936
    %v1968 = vpack.c.b16 %v1939, %v1938
    %v1969 = vpack.c.b16 %v1941, %v1940
    %v1970 = vpack.c.b16 %v1943, %v1942
    %v1971 = vpack.c.b16 %v1945, %v1944
    %v1972 = vpack.c.b16 %v1947, %v1946
    %v1973 = vpack.c.b16 %v1949, %v1948
    %v1974 = vpack.c.b16 %v1951, %v1950
    %v1975 = vpack.c.b16 %v1953, %v1952
    %v1976 = vpack.c.b16 %v1955, %v1954
    %v1977 = vpack.c.b16 %v1957, %v1956
    %v1978 = vpack.c.b16 %v1959, %v1958
    %v1979 = vpack.c.b16 %v1961, %v1960
    %v1980 = vpack.c.b16 %v1963, %v1962
    %v1981 = vpack.c.b16 %v1965, %v1964
    %1998 = vmatpush.bf16.msra.mxu0 %v1973
    %1999 = vmatpush.bf16.msra.mxu0 %v1972
    %2000 = vmatpush.bf16.msra.mxu0 %v1971
    %2001 = vmatpush.bf16.msra.mxu0 %v1970
    %2002 = vmatpush.bf16.msra.mxu0 %v1969
    %2003 = vmatpush.bf16.msra.mxu0 %v1968
    %2004 = vmatpush.bf16.msra.mxu0 %v1967
    %2005 = vmatpush.bf16.msra.mxu0 %v1966
    %2006 = vmatmul.bf16.gmra.mxu0 %v1868
    %v2007 = vpop.f32.mrf.mxu0
    %v2008 = vadd.f32 0.0, %v2007
    %v2009 = vpop.f32.mrf.mxu0
    %v2010 = vadd.f32 0.0, %v2009
    %2011 = vdwg.mxu0
    %2012 = vmatpush.bf16.msra.mxu0 %v1981
    %2013 = vmatpush.bf16.msra.mxu0 %v1980
    %2014 = vmatpush.bf16.msra.mxu0 %v1979
    %2015 = vmatpush.bf16.msra.mxu0 %v1978
    %2016 = vmatpush.bf16.msra.mxu0 %v1977
    %2017 = vmatpush.bf16.msra.mxu0 %v1976
    %2018 = vmatpush.bf16.msra.mxu0 %v1975
    %2019 = vmatpush.bf16.msra.mxu0 %v1974
    %2020 = vmatmul.bf16.gmra.mxu0 %v1869
    %v2021 = vpop.f32.mrf.mxu0
    %v2022 = vadd.f32 %v2008, %v2021
    %v2023 = vpop.f32.mrf.mxu0
    %v2024 = vadd.f32 %v2010, %v2023
    %2025 = vdwg.mxu0
    %v2026 = vpack.c.bf16 %v2022, %v2022
    %v2027 = vpack.c.bf16 %v2024, %v2024
    %2028 = vst [vmem:[%s8] sm:$0xf] %v2026
    %2029 = vst [vmem:[%s8 + $0x4] sm:$0xf] %v2027
    // Predicated region
    $region46: #{classifier_spk_forward.1} parent=1 // pred_check
      _
    $region47: #{classifier_spk_forward.1} parent=1 // pred_check_branch
      %2031 = sbr.rel (0) target = $region49
    $region48: #{classifier_spk_forward.1} parent=1 // pred_region
      _
    $region49: #{classifier_spk_forward.1} parent=1 // pred_fallthru
      _
    // Predicated region
    $region50: #{classifier_spk_forward.1} parent=1 // pred_check
      _
    $region51: #{classifier_spk_forward.1} parent=1 // pred_check_branch
      %2033 = sbr.rel (0) target = $region53
    $region52: #{classifier_spk_forward.1} parent=1 // pred_region
      _
    $region53: #{classifier_spk_forward.1} parent=1 // pred_fallthru
      _
    %2034 = vsyncpa [#allocation3], 1
    %2035 = vsyncpa [#allocation5], 1

</llo_original>
